<compile_context>
chip_gen: v7x
topology: tpu7x:2x2x1
jax: 0.10.0
libtpu: 0.0.40
codegen_flags: <defaults>
</compile_context>

<pallas_src>
import functools

import numpy as np

import jax
import jax.numpy as jnp
from jax.experimental import pallas as pl
from jax.experimental.pallas import tpu as pltpu

LRELU_SLOPE = 0.01
BN_EPS = 1e-5


def _full_spec(shape):
  # Whole-array block (block shape == full array shape), grid=(1,).
  return pl.BlockSpec(shape, lambda *_: (0,) * len(shape))


# ----------------------------------------------------------------------------
# In-kernel helpers (operate on traced values, channel-major 2-D layout).
# ----------------------------------------------------------------------------
def _lane_roll(x, shift, n):
  """y[:, i] = x[:, (i + shift) % n]  (static shift along the lane axis)."""
  k = shift % n
  if k == 0:
    return x
  return jnp.concatenate([x[:, k:], x[:, :k]], axis=1)


def _conv3x3(xv, kmat, masks, W, Nv):
  """Same-size 3x3 conv (== ConvTranspose2d k=3, pad=1 with flipped weights).

  xv:    (Cin, Nv) bf16, lanes ordered (b, i, j); zero padding is emulated with
         per-tap boundary masks (so batch/row boundaries never leak).
  kmat:  (Cout, 9*Cin) bf16, tap-major layout ((p*3+q)*Cin + ci).
  Returns (Cout, Nv) f32 (MXU matmul, f32 accumulation).
  """
  taps = []
  t = 0
  for dp in (-1, 0, 1):
    for dq in (-1, 0, 1):
      tap = _lane_roll(xv, dp * W + dq, Nv)
      if dp != 0 or dq != 0:
        tap = tap * masks[t]          # zero out out-of-image contributions
      taps.append(tap)
      t += 1
  patches = jnp.concatenate(taps, axis=0)                 # (9*Cin, Nv)
  return jnp.dot(kmat, patches, preferred_element_type=jnp.float32)


def _bn_train(a, gamma, beta, count):
  """BatchNorm2d in training mode: batch stats over (N,H,W), biased variance."""
  inv_n = 1.0 / count
  mean = jnp.sum(a, axis=1, keepdims=True) * inv_n        # (C, 1)
  ctr = a - mean
  var = jnp.sum(ctr * ctr, axis=1, keepdims=True) * inv_n
  return ctr * jax.lax.rsqrt(var + BN_EPS) * gamma + beta


# ----------------------------------------------------------------------------
# One fully fused d_block kernel: us + interleave + concat + conv2d + lrelu +
# bn2d + conv1d (+ lrelu + bn1d), all in VMEM.
# ----------------------------------------------------------------------------
def _d_block_kernel(*refs, B, H, W, C_skip, is_last):
  Hc = 3 * H
  HcW = Hc * W
  Nv = B * HcW

  it = iter(refs)
  x_ref = next(it)                                        # (B, C_in, H*W) bf16
  skip_ref = next(it) if C_skip > 0 else None             # (B, C_skip, Hc*W) bf16
  w_us_ref, b_us_ref = next(it), next(it)                 # (3, C, C) bf16, (C, 1) f32
  k2_ref, b2_ref, g2_ref, be2_ref = next(it), next(it), next(it), next(it)
  k1_ref, b1_ref = next(it), next(it)
  if not is_last:
    g1_ref, be1_ref = next(it), next(it)
  m_ref = next(it)                                        # (9, 1, Nv) bf16 tap masks
  o_ref = next(it)                                        # (B, C1, Hc*W)

  masks = [m_ref[t] for t in range(9)]                    # each (1, Nv)

  # ---- us: ConvTranspose2d((3,1), stride (3,1)) + row interleave + skip concat.
  # Output row 3*i+kh of batch b is  W_kh @ x[b, :, i, :] + b_us.  Batches are
  # folded onto the lane axis, lanes ordered (b, i, j).
  cols = []
  for b in range(B):
    xb = x_ref[b]                                         # (C_in, H*W) bf16
    ys = []
    for kh in range(3):
      yk = jnp.dot(w_us_ref[kh], xb, preferred_element_type=jnp.float32)
      ys.append((yk + b_us_ref[...]).astype(jnp.bfloat16))  # (C_us, H*W)
    chunks = []
    for i in range(H):
      for kh in range(3):
        chunks.append(ys[kh][:, i * W:(i + 1) * W])
    col = jnp.concatenate(chunks, axis=1)                 # (C_us, Hc*W), rows 3i+kh
    if C_skip > 0:
      col = jnp.concatenate([col, skip_ref[b]], axis=0)   # channel concat
    cols.append(col)
  xv = cols[0] if B == 1 else jnp.concatenate(cols, axis=1)   # (Ctot, Nv) bf16

  # ---- conv2d (3x3 transposed, pad 1) + leaky_relu + BatchNorm2d (batch stats)
  a2 = _conv3x3(xv, k2_ref[...], masks, W, Nv) + b2_ref[...]
  a2 = jnp.where(a2 >= 0, a2, LRELU_SLOPE * a2)
  a2 = _bn_train(a2, g2_ref[...], be2_ref[...], float(Nv))

  # ---- conv1d (3x3 transposed, pad 1) (+ leaky_relu + BatchNorm2d) ----
  a1 = _conv3x3(a2.astype(jnp.bfloat16), k1_ref[...], masks, W, Nv) + b1_ref[...]
  if not is_last:
    a1 = jnp.where(a1 >= 0, a1, LRELU_SLOPE * a1)
    a1 = _bn_train(a1, g1_ref[...], be1_ref[...], float(Nv))

  # ---- un-fold the batch axis and store lane-dense (C1, Hc*W) slabs ----
  parts = [a1[:, b * HcW:(b + 1) * HcW].astype(o_ref.dtype)[None] for b in range(B)]
  o_ref[...] = parts[0] if B == 1 else jnp.concatenate(parts, axis=0)


# ----------------------------------------------------------------------------
# Host-side (cheap) operand prep + pallas_call wrapper per d_block.
# ----------------------------------------------------------------------------
def _conv_weight_mat(wt):
  """ConvTranspose2d(k=3, pad=1) weight (Cin, Cout, 3, 3) -> (Cout, 9*Cin)
  matrix of the equivalent same-size conv, tap-major ((p*3+q)*Cin + ci)."""
  cin, cout = wt.shape[0], wt.shape[1]
  k = jnp.transpose(wt[:, :, ::-1, ::-1], (1, 2, 3, 0))   # K[co,p,q,ci] = wt[ci,co,2-p,2-q]
  return k.reshape(cout, 9 * cin).astype(jnp.bfloat16)


def _tap_masks(B, Hc, W):
  """(9, 1, B*Hc*W) bf16 boundary masks emulating zero padding for each tap."""
  ii = np.arange(Hc)[:, None]
  jj = np.arange(W)[None, :]
  ms = []
  for dp in (-1, 0, 1):
    for dq in (-1, 0, 1):
      ok = (ii + dp >= 0) & (ii + dp < Hc) & (jj + dq >= 0) & (jj + dq < W)
      ms.append(np.tile(ok.astype(np.float32).reshape(-1), B))
  return jnp.asarray(np.stack(ms, axis=0)[:, None, :], dtype=jnp.bfloat16)


def d_block_apply(x, skip, p, is_last, out_size):
  """One d_block forward.  x: (B, C, H, W) NCHW; skip: (B, Cs, 3H, W) or None."""
  B, C_in, H, W = x.shape
  assert tuple(out_size) == (3 * H, W), f"unsupported output_size {out_size}"
  Hc = 3 * H
  C_skip = 0 if skip is None else skip.shape[1]
  C2 = p["c2_w"].shape[1]
  C1 = p["c1_w"].shape[1]

  # NCHW -> (B, C, H*W) is a free reshape (no transpose); weights are tiny.
  xb = x.reshape(B, C_in, H * W).astype(jnp.bfloat16)
  w_us = jnp.transpose(p["us_w"][:, :, :, 0], (2, 1, 0)).astype(jnp.bfloat16)  # (3, C, C)
  b_us = p["us_b"].reshape(C_in, 1).astype(jnp.float32)
  k2 = _conv_weight_mat(p["c2_w"])
  b2 = p["c2_b"].reshape(C2, 1).astype(jnp.float32)
  g2 = p["bn2_g"].reshape(C2, 1).astype(jnp.float32)
  be2 = p["bn2_b"].reshape(C2, 1).astype(jnp.float32)
  k1 = _conv_weight_mat(p["c1_w"])
  b1 = p["c1_b"].reshape(C1, 1).astype(jnp.float32)

  inputs = [xb]
  if not is_last:
    inputs.append(skip.reshape(B, C_skip, Hc * W).astype(jnp.bfloat16))
  inputs += [w_us, b_us, k2, b2, g2, be2, k1, b1]
  if not is_last:
    inputs += [p["bn1_g"].reshape(C1, 1).astype(jnp.float32),
               p["bn1_b"].reshape(C1, 1).astype(jnp.float32)]
  inputs.append(_tap_masks(B, Hc, W))

  out_dtype = jnp.float32 if is_last else jnp.bfloat16
  kernel = functools.partial(_d_block_kernel, B=B, H=H, W=W,
                             C_skip=C_skip, is_last=is_last)
  out = pl.pallas_call(
      kernel,
      grid=(1,),
      in_specs=[_full_spec(a.shape) for a in inputs],
      out_specs=_full_spec((B, C1, Hc * W)),
      out_shape=jax.ShapeDtypeStruct((B, C1, Hc * W), out_dtype),
      compiler_params=pltpu.CompilerParams(
          dimension_semantics=("arbitrary",),
          vmem_limit_bytes=32 * 1024 * 1024),
  )(*inputs)
  return out.reshape(B, C1, Hc, W)                         # NCHW


def decode_forward(x_nchw, idx, s, c_nchw, params):
  del idx  # unused by the reference forward
  y = d_block_apply(x_nchw, c_nchw[2], params["d2"], False, s[2])
  y = d_block_apply(y,      c_nchw[1], params["d3"], False, s[1])
  y = d_block_apply(y,      None,      params["d4"], True,  s[0])
  return y  # (B, nb_channels, 27*H0, W), float32, NCHW


# ----------------------------------------------------------------------------
# Deterministic parameter init (PyTorch shapes: ConvTranspose2d weight is
# (Cin, Cout, kH, kW); BatchNorm gamma=1, beta=0 by default).
# ----------------------------------------------------------------------------
def init_params(key, nb_channels):
  keys = iter(jax.random.split(key, 64))

  def convT(cin, cout, kh, kw):
    w = jax.random.normal(next(keys), (cin, cout, kh, kw), jnp.float32) / jnp.sqrt(
        float(cin * kh * kw))
    b = 0.01 * jax.random.normal(next(keys), (cout,), jnp.float32)
    return w, b

  def bn_params(c):
    return jnp.ones((c,), jnp.float32), jnp.zeros((c,), jnp.float32)

  params = {}
  # d_block2: inp=80, out=32, not last -> us: 48->48, conv2d: 80->40, conv1d: 40->32
  p = {}
  p["us_w"], p["us_b"] = convT(48, 48, 3, 1)
  p["c2_w"], p["c2_b"] = convT(80, 40, 3, 3)
  p["bn2_g"], p["bn2_b"] = bn_params(40)
  p["c1_w"], p["c1_b"] = convT(40, 32, 3, 3)
  p["bn1_g"], p["bn1_b"] = bn_params(32)
  params["d2"] = p
  # d_block3: inp=48, out=16 -> us: 32->32, conv2d: 48->24, conv1d: 24->16
  p = {}
  p["us_w"], p["us_b"] = convT(32, 32, 3, 1)
  p["c2_w"], p["c2_b"] = convT(48, 24, 3, 3)
  p["bn2_g"], p["bn2_b"] = bn_params(24)
  p["c1_w"], p["c1_b"] = convT(24, 16, 3, 3)
  p["bn1_g"], p["bn1_b"] = bn_params(16)
  params["d3"] = p
  # d_block4: inp=16, out=nb_channels, last -> us: 16->16, conv2d: 16->8, conv1d: 8->nb
  p = {}
  p["us_w"], p["us_b"] = convT(16, 16, 3, 1)
  p["c2_w"], p["c2_b"] = convT(16, 8, 3, 3)
  p["bn2_g"], p["bn2_b"] = bn_params(8)
  p["c1_w"], p["c1_b"] = convT(8, nb_channels, 3, 3)
  params["d4"] = p
  return params


if __name__ == "__main__":
  nb_channels = 2
  B, W, H0 = 2, 8, 2  # small synthetic shapes

  key = jax.random.PRNGKey(0)
  kx, kc2, kc1, kp = jax.random.split(key, 4)

  # NCHW inputs, matching the PyTorch module's conventions.
  x = jax.random.normal(kx, (B, 48, H0, W), jnp.float32)           # decoder input
  c2 = jax.random.normal(kc2, (B, 32, 3 * H0, W), jnp.float32)     # skip for d_block2
  c1 = jax.random.normal(kc1, (B, 16, 9 * H0, W), jnp.float32)     # skip for d_block3
  c0 = None                                                        # unused (isLast path)
  c = [c0, c1, c2]
  s = [(27 * H0, W), (9 * H0, W), (3 * H0, W)]                     # us output sizes
  idx = [None, None, None]                                         # unused by forward

  params = init_params(kp, nb_channels)

  pred = decode_forward(x, idx, s, c, params)
  pred = jax.block_until_ready(pred)
  assert pred.shape == (B, nb_channels, 27 * H0, W), pred.shape
  assert pred.dtype == jnp.float32

  print("KERNEL_OK")
</pallas_src>

<mosaic_0001>
module attributes {stable_mosaic.version = 11 : i64} {
  func.func @_d_block_kernel(%arg0: i32, %arg1: memref<2x48x16xbf16, #tpu.memory_space<vmem>>, %arg2: memref<2x32x48xbf16, #tpu.memory_space<vmem>>, %arg3: memref<3x48x48xbf16, #tpu.memory_space<vmem>>, %arg4: memref<48x1xf32, #tpu.memory_space<vmem>>, %arg5: memref<40x720xbf16, #tpu.memory_space<vmem>>, %arg6: memref<40x1xf32, #tpu.memory_space<vmem>>, %arg7: memref<40x1xf32, #tpu.memory_space<vmem>>, %arg8: memref<40x1xf32, #tpu.memory_space<vmem>>, %arg9: memref<32x360xbf16, #tpu.memory_space<vmem>>, %arg10: memref<32x1xf32, #tpu.memory_space<vmem>>, %arg11: memref<32x1xf32, #tpu.memory_space<vmem>>, %arg12: memref<32x1xf32, #tpu.memory_space<vmem>>, %arg13: memref<9x1x96xbf16, #tpu.memory_space<vmem>>, %arg14: memref<2x32x48xbf16, #tpu.memory_space<vmem>>) attributes {dimension_semantics = [#tpu.dimension_semantics<arbitrary>], iteration_bounds = array<i64: 1>, scalar_prefetch = 0 : i64, scratch_operands = 0 : i64, tpu.core_type = #tpu.core_type<tc>, window_params = [{pipeline_mode = #tpu.pipeline_mode<synchronous>, transform_indices = @transform_0, window_bounds = array<i64: 2, 48, 16>}, {pipeline_mode = #tpu.pipeline_mode<synchronous>, transform_indices = @transform_1, window_bounds = array<i64: 2, 32, 48>}, {pipeline_mode = #tpu.pipeline_mode<synchronous>, transform_indices = @transform_2, window_bounds = array<i64: 3, 48, 48>}, {pipeline_mode = #tpu.pipeline_mode<synchronous>, transform_indices = @transform_3, window_bounds = array<i64: 48, 1>}, {pipeline_mode = #tpu.pipeline_mode<synchronous>, transform_indices = @transform_4, window_bounds = array<i64: 40, 720>}, {pipeline_mode = #tpu.pipeline_mode<synchronous>, transform_indices = @transform_5, window_bounds = array<i64: 40, 1>}, {pipeline_mode = #tpu.pipeline_mode<synchronous>, transform_indices = @transform_6, window_bounds = array<i64: 40, 1>}, {pipeline_mode = #tpu.pipeline_mode<synchronous>, transform_indices = @transform_7, window_bounds = array<i64: 40, 1>}, {pipeline_mode = #tpu.pipeline_mode<synchronous>, transform_indices = @transform_8, window_bounds = array<i64: 32, 360>}, {pipeline_mode = #tpu.pipeline_mode<synchronous>, transform_indices = @transform_9, window_bounds = array<i64: 32, 1>}, {pipeline_mode = #tpu.pipeline_mode<synchronous>, transform_indices = @transform_10, window_bounds = array<i64: 32, 1>}, {pipeline_mode = #tpu.pipeline_mode<synchronous>, transform_indices = @transform_11, window_bounds = array<i64: 32, 1>}, {pipeline_mode = #tpu.pipeline_mode<synchronous>, transform_indices = @transform_12, window_bounds = array<i64: 9, 1, 96>}, {pipeline_mode = #tpu.pipeline_mode<synchronous>, transform_indices = @transform_13, window_bounds = array<i64: 2, 32, 48>}]} {
    %c0 = arith.constant 0 : index
    %c0_0 = arith.constant 0 : index
    %c0_1 = arith.constant 0 : index
    %0 = vector.load %arg13[%c0, %c0_0, %c0_1] : memref<9x1x96xbf16, #tpu.memory_space<vmem>>, vector<1x1x96xbf16>
    %1 = vector.shape_cast %0 : vector<1x1x96xbf16> to vector<1x96xbf16>
    %c1 = arith.constant 1 : index
    %c0_2 = arith.constant 0 : index
    %c0_3 = arith.constant 0 : index
    %2 = vector.load %arg13[%c1, %c0_2, %c0_3] : memref<9x1x96xbf16, #tpu.memory_space<vmem>>, vector<1x1x96xbf16>
    %3 = vector.shape_cast %2 : vector<1x1x96xbf16> to vector<1x96xbf16>
    %c2 = arith.constant 2 : index
    %c0_4 = arith.constant 0 : index
    %c0_5 = arith.constant 0 : index
    %4 = vector.load %arg13[%c2, %c0_4, %c0_5] : memref<9x1x96xbf16, #tpu.memory_space<vmem>>, vector<1x1x96xbf16>
    %5 = vector.shape_cast %4 : vector<1x1x96xbf16> to vector<1x96xbf16>
    %c3 = arith.constant 3 : index
    %c0_6 = arith.constant 0 : index
    %c0_7 = arith.constant 0 : index
    %6 = vector.load %arg13[%c3, %c0_6, %c0_7] : memref<9x1x96xbf16, #tpu.memory_space<vmem>>, vector<1x1x96xbf16>
    %7 = vector.shape_cast %6 : vector<1x1x96xbf16> to vector<1x96xbf16>
    %c5 = arith.constant 5 : index
    %c0_8 = arith.constant 0 : index
    %c0_9 = arith.constant 0 : index
    %8 = vector.load %arg13[%c5, %c0_8, %c0_9] : memref<9x1x96xbf16, #tpu.memory_space<vmem>>, vector<1x1x96xbf16>
    %9 = vector.shape_cast %8 : vector<1x1x96xbf16> to vector<1x96xbf16>
    %c6 = arith.constant 6 : index
    %c0_10 = arith.constant 0 : index
    %c0_11 = arith.constant 0 : index
    %10 = vector.load %arg13[%c6, %c0_10, %c0_11] : memref<9x1x96xbf16, #tpu.memory_space<vmem>>, vector<1x1x96xbf16>
    %11 = vector.shape_cast %10 : vector<1x1x96xbf16> to vector<1x96xbf16>
    %c7 = arith.constant 7 : index
    %c0_12 = arith.constant 0 : index
    %c0_13 = arith.constant 0 : index
    %12 = vector.load %arg13[%c7, %c0_12, %c0_13] : memref<9x1x96xbf16, #tpu.memory_space<vmem>>, vector<1x1x96xbf16>
    %13 = vector.shape_cast %12 : vector<1x1x96xbf16> to vector<1x96xbf16>
    %c8 = arith.constant 8 : index
    %c0_14 = arith.constant 0 : index
    %c0_15 = arith.constant 0 : index
    %14 = vector.load %arg13[%c8, %c0_14, %c0_15] : memref<9x1x96xbf16, #tpu.memory_space<vmem>>, vector<1x1x96xbf16>
    %15 = vector.shape_cast %14 : vector<1x1x96xbf16> to vector<1x96xbf16>
    %c0_16 = arith.constant 0 : index
    %c0_17 = arith.constant 0 : index
    %c0_18 = arith.constant 0 : index
    %16 = vector.load %arg1[%c0_16, %c0_17, %c0_18] : memref<2x48x16xbf16, #tpu.memory_space<vmem>>, vector<1x48x16xbf16>
    %17 = vector.shape_cast %16 : vector<1x48x16xbf16> to vector<48x16xbf16>
    %c0_19 = arith.constant 0 : index
    %c0_20 = arith.constant 0 : index
    %c0_21 = arith.constant 0 : index
    %18 = vector.load %arg3[%c0_19, %c0_20, %c0_21] : memref<3x48x48xbf16, #tpu.memory_space<vmem>>, vector<1x48x48xbf16>
    %19 = vector.shape_cast %18 : vector<1x48x48xbf16> to vector<48x48xbf16>
    %cst = arith.constant dense<0.000000e+00> : vector<48x16xf32>
    %20 = tpu.matmul %19, %17, %cst {dimension_numbers = #tpu.dot_dimension_numbers<[1], [0], [0], [1], [0, 0, 1, 1], [], []>} : vector<48x48xbf16>, vector<48x16xbf16>, vector<48x16xf32> -> vector<48x16xf32>
    %c0_22 = arith.constant 0 : index
    %c0_23 = arith.constant 0 : index
    %21 = vector.load %arg4[%c0_22, %c0_23] : memref<48x1xf32, #tpu.memory_space<vmem>>, vector<48x1xf32>
    %22 = vector.broadcast %21 : vector<48x1xf32> to vector<48x16xf32>
    %23 = arith.addf %20, %22 : vector<48x16xf32>
    %24 = arith.truncf %23 : vector<48x16xf32> to vector<48x16xbf16>
    %c1_24 = arith.constant 1 : index
    %c0_25 = arith.constant 0 : index
    %c0_26 = arith.constant 0 : index
    %25 = vector.load %arg3[%c1_24, %c0_25, %c0_26] : memref<3x48x48xbf16, #tpu.memory_space<vmem>>, vector<1x48x48xbf16>
    %26 = vector.shape_cast %25 : vector<1x48x48xbf16> to vector<48x48xbf16>
    %cst_27 = arith.constant dense<0.000000e+00> : vector<48x16xf32>
    %27 = tpu.matmul %26, %17, %cst_27 {dimension_numbers = #tpu.dot_dimension_numbers<[1], [0], [0], [1], [0, 0, 1, 1], [], []>} : vector<48x48xbf16>, vector<48x16xbf16>, vector<48x16xf32> -> vector<48x16xf32>
    %c0_28 = arith.constant 0 : index
    %c0_29 = arith.constant 0 : index
    %28 = vector.load %arg4[%c0_28, %c0_29] : memref<48x1xf32, #tpu.memory_space<vmem>>, vector<48x1xf32>
    %29 = vector.broadcast %28 : vector<48x1xf32> to vector<48x16xf32>
    %30 = arith.addf %27, %29 : vector<48x16xf32>
    %31 = arith.truncf %30 : vector<48x16xf32> to vector<48x16xbf16>
    %c2_30 = arith.constant 2 : index
    %c0_31 = arith.constant 0 : index
    %c0_32 = arith.constant 0 : index
    %32 = vector.load %arg3[%c2_30, %c0_31, %c0_32] : memref<3x48x48xbf16, #tpu.memory_space<vmem>>, vector<1x48x48xbf16>
    %33 = vector.shape_cast %32 : vector<1x48x48xbf16> to vector<48x48xbf16>
    %cst_33 = arith.constant dense<0.000000e+00> : vector<48x16xf32>
    %34 = tpu.matmul %33, %17, %cst_33 {dimension_numbers = #tpu.dot_dimension_numbers<[1], [0], [0], [1], [0, 0, 1, 1], [], []>} : vector<48x48xbf16>, vector<48x16xbf16>, vector<48x16xf32> -> vector<48x16xf32>
    %c0_34 = arith.constant 0 : index
    %c0_35 = arith.constant 0 : index
    %35 = vector.load %arg4[%c0_34, %c0_35] : memref<48x1xf32, #tpu.memory_space<vmem>>, vector<48x1xf32>
    %36 = vector.broadcast %35 : vector<48x1xf32> to vector<48x16xf32>
    %37 = arith.addf %34, %36 : vector<48x16xf32>
    %38 = arith.truncf %37 : vector<48x16xf32> to vector<48x16xbf16>
    %39 = vector.extract_strided_slice %24 {offsets = [0, 0], sizes = [48, 8], strides = [1, 1]} : vector<48x16xbf16> to vector<48x8xbf16>
    %40 = vector.extract_strided_slice %31 {offsets = [0, 0], sizes = [48, 8], strides = [1, 1]} : vector<48x16xbf16> to vector<48x8xbf16>
    %41 = vector.extract_strided_slice %38 {offsets = [0, 0], sizes = [48, 8], strides = [1, 1]} : vector<48x16xbf16> to vector<48x8xbf16>
    %42 = vector.extract_strided_slice %24 {offsets = [0, 8], sizes = [48, 8], strides = [1, 1]} : vector<48x16xbf16> to vector<48x8xbf16>
    %43 = vector.extract_strided_slice %31 {offsets = [0, 8], sizes = [48, 8], strides = [1, 1]} : vector<48x16xbf16> to vector<48x8xbf16>
    %44 = vector.extract_strided_slice %38 {offsets = [0, 8], sizes = [48, 8], strides = [1, 1]} : vector<48x16xbf16> to vector<48x8xbf16>
    %45 = tpu.concatenate %39, %40, %41, %42, %43, %44 in 1 : vector<48x8xbf16>, vector<48x8xbf16>, vector<48x8xbf16>, vector<48x8xbf16>, vector<48x8xbf16>, vector<48x8xbf16> -> vector<48x48xbf16>
    %c0_36 = arith.constant 0 : index
    %c0_37 = arith.constant 0 : index
    %c0_38 = arith.constant 0 : index
    %46 = vector.load %arg2[%c0_36, %c0_37, %c0_38] : memref<2x32x48xbf16, #tpu.memory_space<vmem>>, vector<1x32x48xbf16>
    %47 = vector.shape_cast %46 : vector<1x32x48xbf16> to vector<32x48xbf16>
    %48 = tpu.concatenate %45, %47 in 0 : vector<48x48xbf16>, vector<32x48xbf16> -> vector<80x48xbf16>
    %c1_39 = arith.constant 1 : index
    %c0_40 = arith.constant 0 : index
    %c0_41 = arith.constant 0 : index
    %49 = vector.load %arg1[%c1_39, %c0_40, %c0_41] : memref<2x48x16xbf16, #tpu.memory_space<vmem>>, vector<1x48x16xbf16>
    %50 = vector.shape_cast %49 : vector<1x48x16xbf16> to vector<48x16xbf16>
    %c0_42 = arith.constant 0 : index
    %c0_43 = arith.constant 0 : index
    %c0_44 = arith.constant 0 : index
    %51 = vector.load %arg3[%c0_42, %c0_43, %c0_44] : memref<3x48x48xbf16, #tpu.memory_space<vmem>>, vector<1x48x48xbf16>
    %52 = vector.shape_cast %51 : vector<1x48x48xbf16> to vector<48x48xbf16>
    %cst_45 = arith.constant dense<0.000000e+00> : vector<48x16xf32>
    %53 = tpu.matmul %52, %50, %cst_45 {dimension_numbers = #tpu.dot_dimension_numbers<[1], [0], [0], [1], [0, 0, 1, 1], [], []>} : vector<48x48xbf16>, vector<48x16xbf16>, vector<48x16xf32> -> vector<48x16xf32>
    %c0_46 = arith.constant 0 : index
    %c0_47 = arith.constant 0 : index
    %54 = vector.load %arg4[%c0_46, %c0_47] : memref<48x1xf32, #tpu.memory_space<vmem>>, vector<48x1xf32>
    %55 = vector.broadcast %54 : vector<48x1xf32> to vector<48x16xf32>
    %56 = arith.addf %53, %55 : vector<48x16xf32>
    %57 = arith.truncf %56 : vector<48x16xf32> to vector<48x16xbf16>
    %c1_48 = arith.constant 1 : index
    %c0_49 = arith.constant 0 : index
    %c0_50 = arith.constant 0 : index
    %58 = vector.load %arg3[%c1_48, %c0_49, %c0_50] : memref<3x48x48xbf16, #tpu.memory_space<vmem>>, vector<1x48x48xbf16>
    %59 = vector.shape_cast %58 : vector<1x48x48xbf16> to vector<48x48xbf16>
    %cst_51 = arith.constant dense<0.000000e+00> : vector<48x16xf32>
    %60 = tpu.matmul %59, %50, %cst_51 {dimension_numbers = #tpu.dot_dimension_numbers<[1], [0], [0], [1], [0, 0, 1, 1], [], []>} : vector<48x48xbf16>, vector<48x16xbf16>, vector<48x16xf32> -> vector<48x16xf32>
    %c0_52 = arith.constant 0 : index
    %c0_53 = arith.constant 0 : index
    %61 = vector.load %arg4[%c0_52, %c0_53] : memref<48x1xf32, #tpu.memory_space<vmem>>, vector<48x1xf32>
    %62 = vector.broadcast %61 : vector<48x1xf32> to vector<48x16xf32>
    %63 = arith.addf %60, %62 : vector<48x16xf32>
    %64 = arith.truncf %63 : vector<48x16xf32> to vector<48x16xbf16>
    %c2_54 = arith.constant 2 : index
    %c0_55 = arith.constant 0 : index
    %c0_56 = arith.constant 0 : index
    %65 = vector.load %arg3[%c2_54, %c0_55, %c0_56] : memref<3x48x48xbf16, #tpu.memory_space<vmem>>, vector<1x48x48xbf16>
    %66 = vector.shape_cast %65 : vector<1x48x48xbf16> to vector<48x48xbf16>
    %cst_57 = arith.constant dense<0.000000e+00> : vector<48x16xf32>
    %67 = tpu.matmul %66, %50, %cst_57 {dimension_numbers = #tpu.dot_dimension_numbers<[1], [0], [0], [1], [0, 0, 1, 1], [], []>} : vector<48x48xbf16>, vector<48x16xbf16>, vector<48x16xf32> -> vector<48x16xf32>
    %c0_58 = arith.constant 0 : index
    %c0_59 = arith.constant 0 : index
    %68 = vector.load %arg4[%c0_58, %c0_59] : memref<48x1xf32, #tpu.memory_space<vmem>>, vector<48x1xf32>
    %69 = vector.broadcast %68 : vector<48x1xf32> to vector<48x16xf32>
    %70 = arith.addf %67, %69 : vector<48x16xf32>
    %71 = arith.truncf %70 : vector<48x16xf32> to vector<48x16xbf16>
    %72 = vector.extract_strided_slice %57 {offsets = [0, 0], sizes = [48, 8], strides = [1, 1]} : vector<48x16xbf16> to vector<48x8xbf16>
    %73 = vector.extract_strided_slice %64 {offsets = [0, 0], sizes = [48, 8], strides = [1, 1]} : vector<48x16xbf16> to vector<48x8xbf16>
    %74 = vector.extract_strided_slice %71 {offsets = [0, 0], sizes = [48, 8], strides = [1, 1]} : vector<48x16xbf16> to vector<48x8xbf16>
    %75 = vector.extract_strided_slice %57 {offsets = [0, 8], sizes = [48, 8], strides = [1, 1]} : vector<48x16xbf16> to vector<48x8xbf16>
    %76 = vector.extract_strided_slice %64 {offsets = [0, 8], sizes = [48, 8], strides = [1, 1]} : vector<48x16xbf16> to vector<48x8xbf16>
    %77 = vector.extract_strided_slice %71 {offsets = [0, 8], sizes = [48, 8], strides = [1, 1]} : vector<48x16xbf16> to vector<48x8xbf16>
    %78 = tpu.concatenate %72, %73, %74, %75, %76, %77 in 1 : vector<48x8xbf16>, vector<48x8xbf16>, vector<48x8xbf16>, vector<48x8xbf16>, vector<48x8xbf16>, vector<48x8xbf16> -> vector<48x48xbf16>
    %c1_60 = arith.constant 1 : index
    %c0_61 = arith.constant 0 : index
    %c0_62 = arith.constant 0 : index
    %79 = vector.load %arg2[%c1_60, %c0_61, %c0_62] : memref<2x32x48xbf16, #tpu.memory_space<vmem>>, vector<1x32x48xbf16>
    %80 = vector.shape_cast %79 : vector<1x32x48xbf16> to vector<32x48xbf16>
    %81 = tpu.concatenate %78, %80 in 0 : vector<48x48xbf16>, vector<32x48xbf16> -> vector<80x48xbf16>
    %82 = tpu.concatenate %48, %81 in 1 : vector<80x48xbf16>, vector<80x48xbf16> -> vector<80x96xbf16>
    %c0_63 = arith.constant 0 : index
    %c0_64 = arith.constant 0 : index
    %83 = vector.load %arg5[%c0_63, %c0_64] : memref<40x720xbf16, #tpu.memory_space<vmem>>, vector<40x720xbf16>
    %84 = vector.extract_strided_slice %82 {offsets = [0, 87], sizes = [80, 9], strides = [1, 1]} : vector<80x96xbf16> to vector<80x9xbf16>
    %85 = vector.extract_strided_slice %82 {offsets = [0, 0], sizes = [80, 87], strides = [1, 1]} : vector<80x96xbf16> to vector<80x87xbf16>
    %86 = tpu.concatenate %84, %85 in 1 : vector<80x9xbf16>, vector<80x87xbf16> -> vector<80x96xbf16>
    %87 = vector.broadcast %1 : vector<1x96xbf16> to vector<80x96xbf16>
    %88 = arith.mulf %86, %87 : vector<80x96xbf16>
    %89 = vector.extract_strided_slice %82 {offsets = [0, 88], sizes = [80, 8], strides = [1, 1]} : vector<80x96xbf16> to vector<80x8xbf16>
    %90 = vector.extract_strided_slice %82 {offsets = [0, 0], sizes = [80, 88], strides = [1, 1]} : vector<80x96xbf16> to vector<80x88xbf16>
    %91 = tpu.concatenate %89, %90 in 1 : vector<80x8xbf16>, vector<80x88xbf16> -> vector<80x96xbf16>
    %92 = vector.broadcast %3 : vector<1x96xbf16> to vector<80x96xbf16>
    %93 = arith.mulf %91, %92 : vector<80x96xbf16>
    %94 = vector.extract_strided_slice %82 {offsets = [0, 89], sizes = [80, 7], strides = [1, 1]} : vector<80x96xbf16> to vector<80x7xbf16>
    %95 = vector.extract_strided_slice %82 {offsets = [0, 0], sizes = [80, 89], strides = [1, 1]} : vector<80x96xbf16> to vector<80x89xbf16>
    %96 = tpu.concatenate %94, %95 in 1 : vector<80x7xbf16>, vector<80x89xbf16> -> vector<80x96xbf16>
    %97 = vector.broadcast %5 : vector<1x96xbf16> to vector<80x96xbf16>
    %98 = arith.mulf %96, %97 : vector<80x96xbf16>
    %99 = vector.extract_strided_slice %82 {offsets = [0, 95], sizes = [80, 1], strides = [1, 1]} : vector<80x96xbf16> to vector<80x1xbf16>
    %100 = vector.extract_strided_slice %82 {offsets = [0, 0], sizes = [80, 95], strides = [1, 1]} : vector<80x96xbf16> to vector<80x95xbf16>
    %101 = tpu.concatenate %99, %100 in 1 : vector<80x1xbf16>, vector<80x95xbf16> -> vector<80x96xbf16>
    %102 = vector.broadcast %7 : vector<1x96xbf16> to vector<80x96xbf16>
    %103 = arith.mulf %101, %102 : vector<80x96xbf16>
    %104 = vector.extract_strided_slice %82 {offsets = [0, 1], sizes = [80, 95], strides = [1, 1]} : vector<80x96xbf16> to vector<80x95xbf16>
    %105 = vector.extract_strided_slice %82 {offsets = [0, 0], sizes = [80, 1], strides = [1, 1]} : vector<80x96xbf16> to vector<80x1xbf16>
    %106 = tpu.concatenate %104, %105 in 1 : vector<80x95xbf16>, vector<80x1xbf16> -> vector<80x96xbf16>
    %107 = vector.broadcast %9 : vector<1x96xbf16> to vector<80x96xbf16>
    %108 = arith.mulf %106, %107 : vector<80x96xbf16>
    %109 = vector.extract_strided_slice %82 {offsets = [0, 7], sizes = [80, 89], strides = [1, 1]} : vector<80x96xbf16> to vector<80x89xbf16>
    %110 = vector.extract_strided_slice %82 {offsets = [0, 0], sizes = [80, 7], strides = [1, 1]} : vector<80x96xbf16> to vector<80x7xbf16>
    %111 = tpu.concatenate %109, %110 in 1 : vector<80x89xbf16>, vector<80x7xbf16> -> vector<80x96xbf16>
    %112 = vector.broadcast %11 : vector<1x96xbf16> to vector<80x96xbf16>
    %113 = arith.mulf %111, %112 : vector<80x96xbf16>
    %114 = vector.extract_strided_slice %82 {offsets = [0, 8], sizes = [80, 88], strides = [1, 1]} : vector<80x96xbf16> to vector<80x88xbf16>
    %115 = vector.extract_strided_slice %82 {offsets = [0, 0], sizes = [80, 8], strides = [1, 1]} : vector<80x96xbf16> to vector<80x8xbf16>
    %116 = tpu.concatenate %114, %115 in 1 : vector<80x88xbf16>, vector<80x8xbf16> -> vector<80x96xbf16>
    %117 = vector.broadcast %13 : vector<1x96xbf16> to vector<80x96xbf16>
    %118 = arith.mulf %116, %117 : vector<80x96xbf16>
    %119 = vector.extract_strided_slice %82 {offsets = [0, 9], sizes = [80, 87], strides = [1, 1]} : vector<80x96xbf16> to vector<80x87xbf16>
    %120 = vector.extract_strided_slice %82 {offsets = [0, 0], sizes = [80, 9], strides = [1, 1]} : vector<80x96xbf16> to vector<80x9xbf16>
    %121 = tpu.concatenate %119, %120 in 1 : vector<80x87xbf16>, vector<80x9xbf16> -> vector<80x96xbf16>
    %122 = vector.broadcast %15 : vector<1x96xbf16> to vector<80x96xbf16>
    %123 = arith.mulf %121, %122 : vector<80x96xbf16>
    %124 = tpu.concatenate %88, %93, %98, %103, %82, %108, %113, %118, %123 in 0 : vector<80x96xbf16>, vector<80x96xbf16>, vector<80x96xbf16>, vector<80x96xbf16>, vector<80x96xbf16>, vector<80x96xbf16>, vector<80x96xbf16>, vector<80x96xbf16>, vector<80x96xbf16> -> vector<720x96xbf16>
    %cst_65 = arith.constant dense<0.000000e+00> : vector<40x96xf32>
    %125 = tpu.matmul %83, %124, %cst_65 {dimension_numbers = #tpu.dot_dimension_numbers<[1], [0], [0], [1], [0, 0, 1, 1], [], []>} : vector<40x720xbf16>, vector<720x96xbf16>, vector<40x96xf32> -> vector<40x96xf32>
    %c0_66 = arith.constant 0 : index
    %c0_67 = arith.constant 0 : index
    %126 = vector.load %arg6[%c0_66, %c0_67] : memref<40x1xf32, #tpu.memory_space<vmem>>, vector<40x1xf32>
    %127 = vector.broadcast %126 : vector<40x1xf32> to vector<40x96xf32>
    %128 = arith.addf %125, %127 : vector<40x96xf32>
    %cst_68 = arith.constant 0.000000e+00 : f32
    %129 = vector.broadcast %cst_68 : f32 to vector<40x96xf32>
    %130 = arith.cmpf oge, %128, %129 : vector<40x96xf32>
    %cst_69 = arith.constant 0.00999999977 : f32
    %131 = vector.broadcast %cst_69 : f32 to vector<40x96xf32>
    %132 = arith.mulf %131, %128 : vector<40x96xf32>
    %133 = arith.select %130, %128, %132 : vector<40x96xi1>, vector<40x96xf32>
    %c0_70 = arith.constant 0 : index
    %c0_71 = arith.constant 0 : index
    %134 = vector.load %arg7[%c0_70, %c0_71] : memref<40x1xf32, #tpu.memory_space<vmem>>, vector<40x1xf32>
    %c0_72 = arith.constant 0 : index
    %c0_73 = arith.constant 0 : index
    %135 = vector.load %arg8[%c0_72, %c0_73] : memref<40x1xf32, #tpu.memory_space<vmem>>, vector<40x1xf32>
    %cst_74 = arith.constant dense<0.000000e+00> : vector<40xf32>
    %136 = vector.multi_reduction <add>, %133, %cst_74 [1] : vector<40x96xf32> to vector<40xf32>
    %137 = vector.shape_cast %136 : vector<40xf32> to vector<40x1xf32>
    %cst_75 = arith.constant 0.010416667 : f32
    %138 = vector.broadcast %cst_75 : f32 to vector<40x1xf32>
    %139 = arith.mulf %137, %138 : vector<40x1xf32>
    %140 = vector.broadcast %139 : vector<40x1xf32> to vector<40x96xf32>
    %141 = arith.subf %133, %140 : vector<40x96xf32>
    %142 = arith.mulf %141, %141 : vector<40x96xf32>
    %cst_76 = arith.constant dense<0.000000e+00> : vector<40xf32>
    %143 = vector.multi_reduction <add>, %142, %cst_76 [1] : vector<40x96xf32> to vector<40xf32>
    %144 = vector.shape_cast %143 : vector<40xf32> to vector<40x1xf32>
    %cst_77 = arith.constant 0.010416667 : f32
    %145 = vector.broadcast %cst_77 : f32 to vector<40x1xf32>
    %146 = arith.mulf %144, %145 : vector<40x1xf32>
    %cst_78 = arith.constant 9.99999974E-6 : f32
    %147 = vector.broadcast %cst_78 : f32 to vector<40x1xf32>
    %148 = arith.addf %146, %147 : vector<40x1xf32>
    %149 = math.rsqrt %148 : vector<40x1xf32>
    %150 = vector.broadcast %149 : vector<40x1xf32> to vector<40x96xf32>
    %151 = arith.mulf %141, %150 : vector<40x96xf32>
    %152 = vector.broadcast %134 : vector<40x1xf32> to vector<40x96xf32>
    %153 = arith.mulf %151, %152 : vector<40x96xf32>
    %154 = vector.broadcast %135 : vector<40x1xf32> to vector<40x96xf32>
    %155 = arith.addf %153, %154 : vector<40x96xf32>
    %156 = arith.truncf %155 : vector<40x96xf32> to vector<40x96xbf16>
    %c0_79 = arith.constant 0 : index
    %c0_80 = arith.constant 0 : index
    %157 = vector.load %arg9[%c0_79, %c0_80] : memref<32x360xbf16, #tpu.memory_space<vmem>>, vector<32x360xbf16>
    %158 = vector.extract_strided_slice %156 {offsets = [0, 87], sizes = [40, 9], strides = [1, 1]} : vector<40x96xbf16> to vector<40x9xbf16>
    %159 = vector.extract_strided_slice %156 {offsets = [0, 0], sizes = [40, 87], strides = [1, 1]} : vector<40x96xbf16> to vector<40x87xbf16>
    %160 = tpu.concatenate %158, %159 in 1 : vector<40x9xbf16>, vector<40x87xbf16> -> vector<40x96xbf16>
    %161 = vector.broadcast %1 : vector<1x96xbf16> to vector<40x96xbf16>
    %162 = arith.mulf %160, %161 : vector<40x96xbf16>
    %163 = vector.extract_strided_slice %156 {offsets = [0, 88], sizes = [40, 8], strides = [1, 1]} : vector<40x96xbf16> to vector<40x8xbf16>
    %164 = vector.extract_strided_slice %156 {offsets = [0, 0], sizes = [40, 88], strides = [1, 1]} : vector<40x96xbf16> to vector<40x88xbf16>
    %165 = tpu.concatenate %163, %164 in 1 : vector<40x8xbf16>, vector<40x88xbf16> -> vector<40x96xbf16>
    %166 = vector.broadcast %3 : vector<1x96xbf16> to vector<40x96xbf16>
    %167 = arith.mulf %165, %166 : vector<40x96xbf16>
    %168 = vector.extract_strided_slice %156 {offsets = [0, 89], sizes = [40, 7], strides = [1, 1]} : vector<40x96xbf16> to vector<40x7xbf16>
    %169 = vector.extract_strided_slice %156 {offsets = [0, 0], sizes = [40, 89], strides = [1, 1]} : vector<40x96xbf16> to vector<40x89xbf16>
    %170 = tpu.concatenate %168, %169 in 1 : vector<40x7xbf16>, vector<40x89xbf16> -> vector<40x96xbf16>
    %171 = vector.broadcast %5 : vector<1x96xbf16> to vector<40x96xbf16>
    %172 = arith.mulf %170, %171 : vector<40x96xbf16>
    %173 = vector.extract_strided_slice %156 {offsets = [0, 95], sizes = [40, 1], strides = [1, 1]} : vector<40x96xbf16> to vector<40x1xbf16>
    %174 = vector.extract_strided_slice %156 {offsets = [0, 0], sizes = [40, 95], strides = [1, 1]} : vector<40x96xbf16> to vector<40x95xbf16>
    %175 = tpu.concatenate %173, %174 in 1 : vector<40x1xbf16>, vector<40x95xbf16> -> vector<40x96xbf16>
    %176 = vector.broadcast %7 : vector<1x96xbf16> to vector<40x96xbf16>
    %177 = arith.mulf %175, %176 : vector<40x96xbf16>
    %178 = vector.extract_strided_slice %156 {offsets = [0, 1], sizes = [40, 95], strides = [1, 1]} : vector<40x96xbf16> to vector<40x95xbf16>
    %179 = vector.extract_strided_slice %156 {offsets = [0, 0], sizes = [40, 1], strides = [1, 1]} : vector<40x96xbf16> to vector<40x1xbf16>
    %180 = tpu.concatenate %178, %179 in 1 : vector<40x95xbf16>, vector<40x1xbf16> -> vector<40x96xbf16>
    %181 = vector.broadcast %9 : vector<1x96xbf16> to vector<40x96xbf16>
    %182 = arith.mulf %180, %181 : vector<40x96xbf16>
    %183 = vector.extract_strided_slice %156 {offsets = [0, 7], sizes = [40, 89], strides = [1, 1]} : vector<40x96xbf16> to vector<40x89xbf16>
    %184 = vector.extract_strided_slice %156 {offsets = [0, 0], sizes = [40, 7], strides = [1, 1]} : vector<40x96xbf16> to vector<40x7xbf16>
    %185 = tpu.concatenate %183, %184 in 1 : vector<40x89xbf16>, vector<40x7xbf16> -> vector<40x96xbf16>
    %186 = vector.broadcast %11 : vector<1x96xbf16> to vector<40x96xbf16>
    %187 = arith.mulf %185, %186 : vector<40x96xbf16>
    %188 = vector.extract_strided_slice %156 {offsets = [0, 8], sizes = [40, 88], strides = [1, 1]} : vector<40x96xbf16> to vector<40x88xbf16>
    %189 = vector.extract_strided_slice %156 {offsets = [0, 0], sizes = [40, 8], strides = [1, 1]} : vector<40x96xbf16> to vector<40x8xbf16>
    %190 = tpu.concatenate %188, %189 in 1 : vector<40x88xbf16>, vector<40x8xbf16> -> vector<40x96xbf16>
    %191 = vector.broadcast %13 : vector<1x96xbf16> to vector<40x96xbf16>
    %192 = arith.mulf %190, %191 : vector<40x96xbf16>
    %193 = vector.extract_strided_slice %156 {offsets = [0, 9], sizes = [40, 87], strides = [1, 1]} : vector<40x96xbf16> to vector<40x87xbf16>
    %194 = vector.extract_strided_slice %156 {offsets = [0, 0], sizes = [40, 9], strides = [1, 1]} : vector<40x96xbf16> to vector<40x9xbf16>
    %195 = tpu.concatenate %193, %194 in 1 : vector<40x87xbf16>, vector<40x9xbf16> -> vector<40x96xbf16>
    %196 = vector.broadcast %15 : vector<1x96xbf16> to vector<40x96xbf16>
    %197 = arith.mulf %195, %196 : vector<40x96xbf16>
    %198 = tpu.concatenate %162, %167, %172, %177, %156, %182, %187, %192, %197 in 0 : vector<40x96xbf16>, vector<40x96xbf16>, vector<40x96xbf16>, vector<40x96xbf16>, vector<40x96xbf16>, vector<40x96xbf16>, vector<40x96xbf16>, vector<40x96xbf16>, vector<40x96xbf16> -> vector<360x96xbf16>
    %cst_81 = arith.constant dense<0.000000e+00> : vector<32x96xf32>
    %199 = tpu.matmul %157, %198, %cst_81 {dimension_numbers = #tpu.dot_dimension_numbers<[1], [0], [0], [1], [0, 0, 1, 1], [], []>} : vector<32x360xbf16>, vector<360x96xbf16>, vector<32x96xf32> -> vector<32x96xf32>
    %c0_82 = arith.constant 0 : index
    %c0_83 = arith.constant 0 : index
    %200 = vector.load %arg10[%c0_82, %c0_83] : memref<32x1xf32, #tpu.memory_space<vmem>>, vector<32x1xf32>
    %201 = vector.broadcast %200 : vector<32x1xf32> to vector<32x96xf32>
    %202 = arith.addf %199, %201 : vector<32x96xf32>
    %cst_84 = arith.constant 0.000000e+00 : f32
    %203 = vector.broadcast %cst_84 : f32 to vector<32x96xf32>
    %204 = arith.cmpf oge, %202, %203 : vector<32x96xf32>
    %cst_85 = arith.constant 0.00999999977 : f32
    %205 = vector.broadcast %cst_85 : f32 to vector<32x96xf32>
    %206 = arith.mulf %205, %202 : vector<32x96xf32>
    %207 = arith.select %204, %202, %206 : vector<32x96xi1>, vector<32x96xf32>
    %c0_86 = arith.constant 0 : index
    %c0_87 = arith.constant 0 : index
    %208 = vector.load %arg11[%c0_86, %c0_87] : memref<32x1xf32, #tpu.memory_space<vmem>>, vector<32x1xf32>
    %c0_88 = arith.constant 0 : index
    %c0_89 = arith.constant 0 : index
    %209 = vector.load %arg12[%c0_88, %c0_89] : memref<32x1xf32, #tpu.memory_space<vmem>>, vector<32x1xf32>
    %cst_90 = arith.constant dense<0.000000e+00> : vector<32xf32>
    %210 = vector.multi_reduction <add>, %207, %cst_90 [1] : vector<32x96xf32> to vector<32xf32>
    %211 = vector.shape_cast %210 : vector<32xf32> to vector<32x1xf32>
    %cst_91 = arith.constant 0.010416667 : f32
    %212 = vector.broadcast %cst_91 : f32 to vector<32x1xf32>
    %213 = arith.mulf %211, %212 : vector<32x1xf32>
    %214 = vector.broadcast %213 : vector<32x1xf32> to vector<32x96xf32>
    %215 = arith.subf %207, %214 : vector<32x96xf32>
    %216 = arith.mulf %215, %215 : vector<32x96xf32>
    %cst_92 = arith.constant dense<0.000000e+00> : vector<32xf32>
    %217 = vector.multi_reduction <add>, %216, %cst_92 [1] : vector<32x96xf32> to vector<32xf32>
    %218 = vector.shape_cast %217 : vector<32xf32> to vector<32x1xf32>
    %cst_93 = arith.constant 0.010416667 : f32
    %219 = vector.broadcast %cst_93 : f32 to vector<32x1xf32>
    %220 = arith.mulf %218, %219 : vector<32x1xf32>
    %cst_94 = arith.constant 9.99999974E-6 : f32
    %221 = vector.broadcast %cst_94 : f32 to vector<32x1xf32>
    %222 = arith.addf %220, %221 : vector<32x1xf32>
    %223 = math.rsqrt %222 : vector<32x1xf32>
    %224 = vector.broadcast %223 : vector<32x1xf32> to vector<32x96xf32>
    %225 = arith.mulf %215, %224 : vector<32x96xf32>
    %226 = vector.broadcast %208 : vector<32x1xf32> to vector<32x96xf32>
    %227 = arith.mulf %225, %226 : vector<32x96xf32>
    %228 = vector.broadcast %209 : vector<32x1xf32> to vector<32x96xf32>
    %229 = arith.addf %227, %228 : vector<32x96xf32>
    %230 = vector.extract_strided_slice %229 {offsets = [0, 0], sizes = [32, 48], strides = [1, 1]} : vector<32x96xf32> to vector<32x48xf32>
    %231 = arith.truncf %230 : vector<32x48xf32> to vector<32x48xbf16>
    %232 = vector.shape_cast %231 : vector<32x48xbf16> to vector<1x32x48xbf16>
    %233 = vector.extract_strided_slice %229 {offsets = [0, 48], sizes = [32, 48], strides = [1, 1]} : vector<32x96xf32> to vector<32x48xf32>
    %234 = arith.truncf %233 : vector<32x48xf32> to vector<32x48xbf16>
    %235 = vector.shape_cast %234 : vector<32x48xbf16> to vector<1x32x48xbf16>
    %236 = tpu.concatenate %232, %235 in 0 : vector<1x32x48xbf16>, vector<1x32x48xbf16> -> vector<2x32x48xbf16>
    %c0_95 = arith.constant 0 : index
    %c0_96 = arith.constant 0 : index
    %c0_97 = arith.constant 0 : index
    %237 = vector.load %arg14[%c0_95, %c0_96, %c0_97] : memref<2x32x48xbf16, #tpu.memory_space<vmem>>, vector<2x32x48xbf16>
    tpu.vector_store %arg14[%c0_95, %c0_96, %c0_97], %236 {strides = array<i32>} : memref<2x32x48xbf16, #tpu.memory_space<vmem>>, vector<2x32x48xbf16>,
    return
  }
  func.func @transform_0(%arg0: i32) -> (i32, i32, i32) {
    %c0_i32 = arith.constant 0 : i32
    %c0_i32_0 = arith.constant 0 : i32
    %c0_i32_1 = arith.constant 0 : i32
    %c0_i32_2 = arith.constant 0 : i32
    return %c0_i32, %c0_i32_0, %c0_i32_1 : i32, i32, i32
  }
  func.func @transform_1(%arg0: i32) -> (i32, i32, i32) {
    %c0_i32 = arith.constant 0 : i32
    %c0_i32_0 = arith.constant 0 : i32
    %c0_i32_1 = arith.constant 0 : i32
    %c0_i32_2 = arith.constant 0 : i32
    return %c0_i32, %c0_i32_0, %c0_i32_1 : i32, i32, i32
  }
  func.func @transform_2(%arg0: i32) -> (i32, i32, i32) {
    %c0_i32 = arith.constant 0 : i32
    %c0_i32_0 = arith.constant 0 : i32
    %c0_i32_1 = arith.constant 0 : i32
    %c0_i32_2 = arith.constant 0 : i32
    return %c0_i32, %c0_i32_0, %c0_i32_1 : i32, i32, i32
  }
  func.func @transform_3(%arg0: i32) -> (i32, i32) {
    %c0_i32 = arith.constant 0 : i32
    %c0_i32_0 = arith.constant 0 : i32
    %c0_i32_1 = arith.constant 0 : i32
    return %c0_i32, %c0_i32_0 : i32, i32
  }
  func.func @transform_4(%arg0: i32) -> (i32, i32) {
    %c0_i32 = arith.constant 0 : i32
    %c0_i32_0 = arith.constant 0 : i32
    %c0_i32_1 = arith.constant 0 : i32
    return %c0_i32, %c0_i32_0 : i32, i32
  }
  func.func @transform_5(%arg0: i32) -> (i32, i32) {
    %c0_i32 = arith.constant 0 : i32
    %c0_i32_0 = arith.constant 0 : i32
    %c0_i32_1 = arith.constant 0 : i32
    return %c0_i32, %c0_i32_0 : i32, i32
  }
  func.func @transform_6(%arg0: i32) -> (i32, i32) {
    %c0_i32 = arith.constant 0 : i32
    %c0_i32_0 = arith.constant 0 : i32
    %c0_i32_1 = arith.constant 0 : i32
    return %c0_i32, %c0_i32_0 : i32, i32
  }
  func.func @transform_7(%arg0: i32) -> (i32, i32) {
    %c0_i32 = arith.constant 0 : i32
    %c0_i32_0 = arith.constant 0 : i32
    %c0_i32_1 = arith.constant 0 : i32
    return %c0_i32, %c0_i32_0 : i32, i32
  }
  func.func @transform_8(%arg0: i32) -> (i32, i32) {
    %c0_i32 = arith.constant 0 : i32
    %c0_i32_0 = arith.constant 0 : i32
    %c0_i32_1 = arith.constant 0 : i32
    return %c0_i32, %c0_i32_0 : i32, i32
  }
  func.func @transform_9(%arg0: i32) -> (i32, i32) {
    %c0_i32 = arith.constant 0 : i32
    %c0_i32_0 = arith.constant 0 : i32
    %c0_i32_1 = arith.constant 0 : i32
    return %c0_i32, %c0_i32_0 : i32, i32
  }
  func.func @transform_10(%arg0: i32) -> (i32, i32) {
    %c0_i32 = arith.constant 0 : i32
    %c0_i32_0 = arith.constant 0 : i32
    %c0_i32_1 = arith.constant 0 : i32
    return %c0_i32, %c0_i32_0 : i32, i32
  }
  func.func @transform_11(%arg0: i32) -> (i32, i32) {
    %c0_i32 = arith.constant 0 : i32
    %c0_i32_0 = arith.constant 0 : i32
    %c0_i32_1 = arith.constant 0 : i32
    return %c0_i32, %c0_i32_0 : i32, i32
  }
  func.func @transform_12(%arg0: i32) -> (i32, i32, i32) {
    %c0_i32 = arith.constant 0 : i32
    %c0_i32_0 = arith.constant 0 : i32
    %c0_i32_1 = arith.constant 0 : i32
    %c0_i32_2 = arith.constant 0 : i32
    return %c0_i32, %c0_i32_0, %c0_i32_1 : i32, i32, i32
  }
  func.func @transform_13(%arg0: i32) -> (i32, i32, i32) {
    %c0_i32 = arith.constant 0 : i32
    %c0_i32_0 = arith.constant 0 : i32
    %c0_i32_1 = arith.constant 0 : i32
    %c0_i32_2 = arith.constant 0 : i32
    return %c0_i32, %c0_i32_0, %c0_i32_1 : i32, i32, i32
  }
}

</mosaic_0001>

<llo_original>
// kernel: tpu_custom_call.1
$region0: #{tpu_custom_call.1}
  #allocation0 [shape = 'u32[]', space=smem, size = 0x4, offset = 0x4, fixed_abs, tag = 'smem constant byte address 0x4 - core index']
  #allocation1 [shape = 'u32[144,128]{1,0:T(1,128)}', space=vmem, size = 0x12000, scoped, tag = 'internal scratch']
  %s0 = inlined_call_operand.vmem [shape: bf16[2,48,16], index: 0, kind: input, shape index: {}]
  %s1 = inlined_call_operand.vmem [shape: bf16[2,32,48], index: 1, kind: input, shape index: {}]
  %s2 = inlined_call_operand.vmem [shape: bf16[3,48,48], index: 2, kind: input, shape index: {}]
  %s3 = inlined_call_operand.vmem [shape: f32[48,1], index: 3, kind: input, shape index: {}]
  %s4 = inlined_call_operand.vmem [shape: bf16[40,720], index: 4, kind: input, shape index: {}]
  %s5 = inlined_call_operand.vmem [shape: f32[40,1], index: 5, kind: input, shape index: {}]
  %s6 = inlined_call_operand.vmem [shape: f32[40,1], index: 6, kind: input, shape index: {}]
  %s7 = inlined_call_operand.vmem [shape: f32[40,1], index: 7, kind: input, shape index: {}]
  %s8 = inlined_call_operand.vmem [shape: bf16[32,360], index: 8, kind: input, shape index: {}]
  %s9 = inlined_call_operand.vmem [shape: f32[32,1], index: 9, kind: input, shape index: {}]
  %s10 = inlined_call_operand.vmem [shape: f32[32,1], index: 10, kind: input, shape index: {}]
  %s11 = inlined_call_operand.vmem [shape: f32[32,1], index: 11, kind: input, shape index: {}]
  %s12 = inlined_call_operand.vmem [shape: bf16[9,1,96], index: 12, kind: input, shape index: {}]
  %s13 = inlined_call_operand.hbm [shape: bf16[2,32,48], index: 13, kind: output, shape index: {}]
  %s14 = sld [smem:[#allocation0]]
  $region62: #{tpu_custom_call.1} parent=0
    _
  %s16 = ssub.s32 1, %s14
  %s17 = scalar_select 0, %s16, %s14
  $region1: #{tpu_custom_call.1} parent=0
    #allocation2 [shape = 'u8[16384]{0}', space=vmem, size = 0x4000, scoped, tag = 'output window, operand 0, single buffered']
    #allocation3 [shape = 's32[1]{0}', space=sflag, size = 0x4, scoped, tag = 'scoped memory for tpu_custom_call.1']
    %18 = vsyncpa [#allocation3], 0
    // Predicated region
    $region2: #{tpu_custom_call.1} parent=1 // pred_check
      _
    $region3: #{tpu_custom_call.1} parent=1 // pred_check_branch
      %20 = sbr.rel (0) target = $region5
    $region4: #{tpu_custom_call.1} parent=1 // pred_region
      _
    $region5: #{tpu_custom_call.1} parent=1 // pred_fallthru
      _
    // Predicated region
    $region6: #{tpu_custom_call.1} parent=1 // pred_check
      _
    $region7: #{tpu_custom_call.1} parent=1 // pred_check_branch
      %22 = sbr.rel (0) target = $region9
    $region8: #{tpu_custom_call.1} parent=1 // pred_region
      _
    $region9: #{tpu_custom_call.1} parent=1 // pred_fallthru
      _
    // Predicated region
    $region10: #{tpu_custom_call.1} parent=1 // pred_check
      _
    $region11: #{tpu_custom_call.1} parent=1 // pred_check_branch
      %24 = sbr.rel (0) target = $region13
    $region12: #{tpu_custom_call.1} parent=1 // pred_region
      _
    $region13: #{tpu_custom_call.1} parent=1 // pred_fallthru
      _
    // Predicated region
    $region14: #{tpu_custom_call.1} parent=1 // pred_check
      _
    $region15: #{tpu_custom_call.1} parent=1 // pred_check_branch
      %26 = sbr.rel (0) target = $region17
    $region16: #{tpu_custom_call.1} parent=1 // pred_region
      _
    $region17: #{tpu_custom_call.1} parent=1 // pred_fallthru
      _
    // Predicated region
    $region18: #{tpu_custom_call.1} parent=1 // pred_check
      _
    $region19: #{tpu_custom_call.1} parent=1 // pred_check_branch
      %28 = sbr.rel (0) target = $region21
    $region20: #{tpu_custom_call.1} parent=1 // pred_region
      _
    $region21: #{tpu_custom_call.1} parent=1 // pred_fallthru
      _
    // Predicated region
    $region22: #{tpu_custom_call.1} parent=1 // pred_check
      _
    $region23: #{tpu_custom_call.1} parent=1 // pred_check_branch
      %30 = sbr.rel (0) target = $region25
    $region24: #{tpu_custom_call.1} parent=1 // pred_region
      _
    $region25: #{tpu_custom_call.1} parent=1 // pred_fallthru
      _
    // Predicated region
    $region26: #{tpu_custom_call.1} parent=1 // pred_check
      _
    $region27: #{tpu_custom_call.1} parent=1 // pred_check_branch
      %32 = sbr.rel (0) target = $region29
    $region28: #{tpu_custom_call.1} parent=1 // pred_region
      _
    $region29: #{tpu_custom_call.1} parent=1 // pred_fallthru
      _
    // Predicated region
    $region30: #{tpu_custom_call.1} parent=1 // pred_check
      _
    $region31: #{tpu_custom_call.1} parent=1 // pred_check_branch
      %34 = sbr.rel (0) target = $region33
    $region32: #{tpu_custom_call.1} parent=1 // pred_region
      _
    $region33: #{tpu_custom_call.1} parent=1 // pred_fallthru
      _
    // Predicated region
    $region34: #{tpu_custom_call.1} parent=1 // pred_check
      _
    $region35: #{tpu_custom_call.1} parent=1 // pred_check_branch
      %36 = sbr.rel (0) target = $region37
    $region36: #{tpu_custom_call.1} parent=1 // pred_region
      _
    $region37: #{tpu_custom_call.1} parent=1 // pred_fallthru
      _
    // Predicated region
    $region38: #{tpu_custom_call.1} parent=1 // pred_check
      _
    $region39: #{tpu_custom_call.1} parent=1 // pred_check_branch
      %38 = sbr.rel (0) target = $region41
    $region40: #{tpu_custom_call.1} parent=1 // pred_region
      _
    $region41: #{tpu_custom_call.1} parent=1 // pred_fallthru
      _
    // Predicated region
    $region42: #{tpu_custom_call.1} parent=1 // pred_check
      _
    $region43: #{tpu_custom_call.1} parent=1 // pred_check_branch
      %40 = sbr.rel (0) target = $region45
    $region44: #{tpu_custom_call.1} parent=1 // pred_region
      _
    $region45: #{tpu_custom_call.1} parent=1 // pred_fallthru
      _
    // Predicated region
    $region46: #{tpu_custom_call.1} parent=1 // pred_check
      _
    $region47: #{tpu_custom_call.1} parent=1 // pred_check_branch
      %42 = sbr.rel (0) target = $region49
    $region48: #{tpu_custom_call.1} parent=1 // pred_region
      _
    $region49: #{tpu_custom_call.1} parent=1 // pred_fallthru
      _
    // Predicated region
    $region50: #{tpu_custom_call.1} parent=1 // pred_check
      _
    $region51: #{tpu_custom_call.1} parent=1 // pred_check_branch
      %44 = sbr.rel (0) target = $region53
    $region52: #{tpu_custom_call.1} parent=1 // pred_region
      _
    $region53: #{tpu_custom_call.1} parent=1 // pred_fallthru
      _
    %v46 = vld [vmem:[%s12] sm:$0x1]
    %s47 = scalar_lea.vmem %s12, 1
    %v48 = vld [vmem:[%s47] sm:$0x1]
    %s49 = scalar_lea.vmem %s12, 2
    %v50 = vld [vmem:[%s49] sm:$0x1]
    %s51 = scalar_lea.vmem %s12, 3
    %v52 = vld [vmem:[%s51] sm:$0x1]
    %s53 = scalar_lea.vmem %s12, 5
    %v54 = vld [vmem:[%s53] sm:$0x1]
    %s55 = scalar_lea.vmem %s12, 6
    %v56 = vld [vmem:[%s55] sm:$0x1]
    %s57 = scalar_lea.vmem %s12, 7
    %v58 = vld [vmem:[%s57] sm:$0x1]
    %s59 = scalar_lea.vmem %s12, 8
    %v60 = vld [vmem:[%s59] sm:$0x1]
    %v61 = vld [vmem:[%s0] sm:$0xf]
    %v62 = vld [vmem:[%s0 + $0x4] sm:$0xf]
    %v63 = vld [vmem:[%s0 + $0x8] sm:$0xf]
    %v64 = vld [vmem:[%s0 + $0xc] sm:$0xf]
    %v65 = vld [vmem:[%s0 + $0x10] sm:$0xf]
    %v66 = vld [vmem:[%s0 + $0x14] sm:$0xf]
    %v67 = vld [vmem:[%s2] sm:$0xf]
    %v68 = vld [vmem:[%s2 + $0x4] sm:$0xf]
    %v69 = vld [vmem:[%s2 + $0x8] sm:$0xf]
    %v70 = vld [vmem:[%s2 + $0xc] sm:$0xf]
    %v71 = vld [vmem:[%s2 + $0x10] sm:$0xf]
    %v72 = vld [vmem:[%s2 + $0x14] sm:$0xf]
    %v73 = vld [vmem:[%s3] sm:$0xff]
    %v74 = vld [vmem:[%s3 + $0x8] sm:$0xff]
    %v75 = vld [vmem:[%s3 + $0x10] sm:$0xff]
    %v76 = vld [vmem:[%s3 + $0x18] sm:$0xff]
    %v77 = vld [vmem:[%s3 + $0x20] sm:$0xff]
    %v78 = vld [vmem:[%s3 + $0x28] sm:$0xff]
    %80 = vset.pattern.permute.xlu0 0
    %81 = vperm.xlu0 %80, %v73
    %v82 = vpop.permute.xlu0 %81
    %85 = vset.pattern.permute.xlu0 0
    %86 = vperm.xlu0 %85, %v74
    %v87 = vpop.permute.xlu0 %86
    %90 = vset.pattern.permute.xlu0 0
    %91 = vperm.xlu0 %90, %v75
    %v92 = vpop.permute.xlu0 %91
    %95 = vset.pattern.permute.xlu0 0
    %96 = vperm.xlu0 %95, %v76
    %v97 = vpop.permute.xlu0 %96
    %100 = vset.pattern.permute.xlu0 0
    %101 = vperm.xlu0 %100, %v77
    %v102 = vpop.permute.xlu0 %101
    %105 = vset.pattern.permute.xlu0 0
    %106 = vperm.xlu0 %105, %v78
    %v107 = vpop.permute.xlu0 %106
    %v115 = vunpack.c.l.b16 %v67
    %v116 = vunpack.c.l.b16 %v68
    %v117 = vunpack.c.l.b16 %v69
    %v118 = vunpack.c.l.b16 %v70
    %v119 = vunpack.c.l.b16 %v71
    %v120 = vunpack.c.l.b16 %v72
    %v121 = vpack.c.b16 %v116, %v115
    %v122 = vpack.c.b16 %v118, %v117
    %v123 = vpack.c.b16 %v120, %v119
    %v130 = vunpack.c.l.b16 %v61
    %v131 = vunpack.c.l.b16 %v62
    %v132 = vunpack.c.l.b16 %v63
    %v133 = vunpack.c.l.b16 %v64
    %v134 = vunpack.c.l.b16 %v65
    %v135 = vunpack.c.l.b16 %v66
    %v136 = vpack.c.b16 %v131, %v130
    %v137 = vpack.c.b16 %v133, %v132
    %v138 = vpack.c.b16 %v135, %v134
    %vm142 = vcmask 392192
    %v144 = vsel %vm142, %v121, 0
    %v147 = vsel %vm142, %v122, 0
    %v150 = vsel %vm142, %v123, 0
    %152 = vmatprep.subr.bf16.mxu0 0
    %153 = vmatpush1.bf16.msra.mxu0 %v136
    %154 = vmatprep.subr.bf16.mxu0 0
    %155 = vmatpush1.bf16.msra.mxu0 %v137
    %156 = vmatprep.subr.bf16.mxu0 0
    %157 = vmatpush1.bf16.msra.mxu0 %v138
    %158 = vmatprep.subr.bf16.mxu0 0
    %159 = vmatpush1.bf16.msra.mxu0 0
    %160 = vmatprep.subr.bf16.mxu0 0
    %161 = vmatpush1.bf16.msra.mxu0 0
    %162 = vmatprep.subr.bf16.mxu0 0
    %163 = vmatpush1.bf16.msra.mxu0 0
    %164 = vmatprep.subr.bf16.mxu0 0
    %165 = vmatpush1.bf16.msra.mxu0 0
    %166 = vmatprep.subr.bf16.mxu0 0
    %167 = vmatpush1.bf16.msra.mxu0 0
    %168 = vmatprep.subr.bf16.mxu0 0
    %169 = vmatpush1.bf16.msra.mxu0 0
    %170 = vmatprep.subr.bf16.mxu0 0
    %171 = vmatpush1.bf16.msra.mxu0 0
    %172 = vmatprep.subr.bf16.mxu0 0
    %173 = vmatpush1.bf16.msra.mxu0 0
    %174 = vmatprep.subr.bf16.mxu0 0
    %175 = vmatpush1.bf16.msra.mxu0 0
    %176 = vmatprep.subr.bf16.mxu0 0
    %177 = vmatpush1.bf16.msra.mxu0 0
    %178 = vmatprep.subr.bf16.mxu0 0
    %179 = vmatpush1.bf16.msra.mxu0 0
    %180 = vmatprep.subr.bf16.mxu0 0
    %181 = vmatpush1.bf16.msra.mxu0 0
    %182 = vmatprep.subr.bf16.mxu0 0
    %183 = vmatpush1.bf16.msra.mxu0 0
    %184 = vmatprep.mubr.bf16.mxu0 0
    %185 = vmatmul.mubr.bf16.gmra.mrb[0].mxu0 %v144
    %v186 = vpop.f32.mrb[0].mxu0
    %v187 = vadd.f32 %v82, %v186
    %v188 = vpop.f32.mrb[0].mxu0
    %v189 = vpop.f32.mrb[0].mxu0
    %v190 = vadd.f32 %v87, %v189
    %v191 = vpop.f32.mrb[0].mxu0
    %192 = vmatprep.mubr.bf16.mxu0 0
    %193 = vmatmul.mubr.bf16.gmra.mrb[0].mxu0 %v147
    %v194 = vpop.f32.mrb[0].mxu0
    %v195 = vadd.f32 %v92, %v194
    %v196 = vpop.f32.mrb[0].mxu0
    %v197 = vpop.f32.mrb[0].mxu0
    %v198 = vadd.f32 %v97, %v197
    %v199 = vpop.f32.mrb[0].mxu0
    %200 = vmatprep.mubr.bf16.mxu0 0
    %201 = vmatmul.mubr.bf16.gmra.mrb[0].mxu0 %v150
    %v202 = vpop.f32.mrb[0].mxu0
    %v203 = vadd.f32 %v102, %v202
    %v204 = vpop.f32.mrb[0].mxu0
    %v205 = vpop.f32.mrb[0].mxu0
    %v206 = vadd.f32 %v107, %v205
    %v207 = vpop.f32.mrb[0].mxu0
    %208 = vdwg.mxu0
    %v209 = vpack.c.bf16 %v190, %v187
    %v210 = vpack.c.bf16 %v198, %v195
    %v211 = vpack.c.bf16 %v206, %v203
    %s212 = scalar_lea.vmem %s2, 24
    %v213 = vld [vmem:[%s212] sm:$0xf]
    %v214 = vld [vmem:[%s212 + $0x4] sm:$0xf]
    %v215 = vld [vmem:[%s212 + $0x8] sm:$0xf]
    %v216 = vld [vmem:[%s212 + $0xc] sm:$0xf]
    %v217 = vld [vmem:[%s212 + $0x10] sm:$0xf]
    %v218 = vld [vmem:[%s212 + $0x14] sm:$0xf]
    %v225 = vunpack.c.l.b16 %v213
    %v226 = vunpack.c.l.b16 %v214
    %v227 = vunpack.c.l.b16 %v215
    %v228 = vunpack.c.l.b16 %v216
    %v229 = vunpack.c.l.b16 %v217
    %v230 = vunpack.c.l.b16 %v218
    %v231 = vpack.c.b16 %v226, %v225
    %v232 = vpack.c.b16 %v228, %v227
    %v233 = vpack.c.b16 %v230, %v229
    %v235 = vsel %vm142, %v231, 0
    %v238 = vsel %vm142, %v232, 0
    %v241 = vsel %vm142, %v233, 0
    %243 = vmatprep.subr.bf16.mxu0 0
    %244 = vmatpush1.bf16.msra.mxu0 %v136
    %245 = vmatprep.subr.bf16.mxu0 0
    %246 = vmatpush1.bf16.msra.mxu0 %v137
    %247 = vmatprep.subr.bf16.mxu0 0
    %248 = vmatpush1.bf16.msra.mxu0 %v138
    %249 = vmatprep.subr.bf16.mxu0 0
    %250 = vmatpush1.bf16.msra.mxu0 0
    %251 = vmatprep.subr.bf16.mxu0 0
    %252 = vmatpush1.bf16.msra.mxu0 0
    %253 = vmatprep.subr.bf16.mxu0 0
    %254 = vmatpush1.bf16.msra.mxu0 0
    %255 = vmatprep.subr.bf16.mxu0 0
    %256 = vmatpush1.bf16.msra.mxu0 0
    %257 = vmatprep.subr.bf16.mxu0 0
    %258 = vmatpush1.bf16.msra.mxu0 0
    %259 = vmatprep.subr.bf16.mxu0 0
    %260 = vmatpush1.bf16.msra.mxu0 0
    %261 = vmatprep.subr.bf16.mxu0 0
    %262 = vmatpush1.bf16.msra.mxu0 0
    %263 = vmatprep.subr.bf16.mxu0 0
    %264 = vmatpush1.bf16.msra.mxu0 0
    %265 = vmatprep.subr.bf16.mxu0 0
    %266 = vmatpush1.bf16.msra.mxu0 0
    %267 = vmatprep.subr.bf16.mxu0 0
    %268 = vmatpush1.bf16.msra.mxu0 0
    %269 = vmatprep.subr.bf16.mxu0 0
    %270 = vmatpush1.bf16.msra.mxu0 0
    %271 = vmatprep.subr.bf16.mxu0 0
    %272 = vmatpush1.bf16.msra.mxu0 0
    %273 = vmatprep.subr.bf16.mxu0 0
    %274 = vmatpush1.bf16.msra.mxu0 0
    %275 = vmatprep.mubr.bf16.mxu0 0
    %276 = vmatmul.mubr.bf16.gmra.mrb[0].mxu0 %v235
    %v277 = vpop.f32.mrb[0].mxu0
    %v278 = vadd.f32 %v82, %v277
    %v279 = vpop.f32.mrb[0].mxu0
    %v280 = vpop.f32.mrb[0].mxu0
    %v281 = vadd.f32 %v87, %v280
    %v282 = vpop.f32.mrb[0].mxu0
    %283 = vmatprep.mubr.bf16.mxu0 0
    %284 = vmatmul.mubr.bf16.gmra.mrb[0].mxu0 %v238
    %v285 = vpop.f32.mrb[0].mxu0
    %v286 = vadd.f32 %v92, %v285
    %v287 = vpop.f32.mrb[0].mxu0
    %v288 = vpop.f32.mrb[0].mxu0
    %v289 = vadd.f32 %v97, %v288
    %v290 = vpop.f32.mrb[0].mxu0
    %291 = vmatprep.mubr.bf16.mxu0 0
    %292 = vmatmul.mubr.bf16.gmra.mrb[0].mxu0 %v241
    %v293 = vpop.f32.mrb[0].mxu0
    %v294 = vadd.f32 %v102, %v293
    %v295 = vpop.f32.mrb[0].mxu0
    %v296 = vpop.f32.mrb[0].mxu0
    %v297 = vadd.f32 %v107, %v296
    %v298 = vpop.f32.mrb[0].mxu0
    %299 = vdwg.mxu0
    %v300 = vpack.c.bf16 %v281, %v278
    %v301 = vpack.c.bf16 %v289, %v286
    %v302 = vpack.c.bf16 %v297, %v294
    %s303 = scalar_lea.vmem %s2, 48
    %v304 = vld [vmem:[%s303] sm:$0xf]
    %v305 = vld [vmem:[%s303 + $0x4] sm:$0xf]
    %v306 = vld [vmem:[%s303 + $0x8] sm:$0xf]
    %v307 = vld [vmem:[%s303 + $0xc] sm:$0xf]
    %v308 = vld [vmem:[%s303 + $0x10] sm:$0xf]
    %v309 = vld [vmem:[%s303 + $0x14] sm:$0xf]
    %v316 = vunpack.c.l.b16 %v304
    %v317 = vunpack.c.l.b16 %v305
    %v318 = vunpack.c.l.b16 %v306
    %v319 = vunpack.c.l.b16 %v307
    %v320 = vunpack.c.l.b16 %v308
    %v321 = vunpack.c.l.b16 %v309
    %v322 = vpack.c.b16 %v317, %v316
    %v323 = vpack.c.b16 %v319, %v318
    %v324 = vpack.c.b16 %v321, %v320
    %v326 = vsel %vm142, %v322, 0
    %v329 = vsel %vm142, %v323, 0
    %v332 = vsel %vm142, %v324, 0
    %334 = vmatprep.subr.bf16.mxu0 0
    %335 = vmatpush1.bf16.msra.mxu0 %v136
    %336 = vmatprep.subr.bf16.mxu0 0
    %337 = vmatpush1.bf16.msra.mxu0 %v137
    %338 = vmatprep.subr.bf16.mxu0 0
    %339 = vmatpush1.bf16.msra.mxu0 %v138
    %340 = vmatprep.subr.bf16.mxu0 0
    %341 = vmatpush1.bf16.msra.mxu0 0
    %342 = vmatprep.subr.bf16.mxu0 0
    %343 = vmatpush1.bf16.msra.mxu0 0
    %344 = vmatprep.subr.bf16.mxu0 0
    %345 = vmatpush1.bf16.msra.mxu0 0
    %346 = vmatprep.subr.bf16.mxu0 0
    %347 = vmatpush1.bf16.msra.mxu0 0
    %348 = vmatprep.subr.bf16.mxu0 0
    %349 = vmatpush1.bf16.msra.mxu0 0
    %350 = vmatprep.subr.bf16.mxu0 0
    %351 = vmatpush1.bf16.msra.mxu0 0
    %352 = vmatprep.subr.bf16.mxu0 0
    %353 = vmatpush1.bf16.msra.mxu0 0
    %354 = vmatprep.subr.bf16.mxu0 0
    %355 = vmatpush1.bf16.msra.mxu0 0
    %356 = vmatprep.subr.bf16.mxu0 0
    %357 = vmatpush1.bf16.msra.mxu0 0
    %358 = vmatprep.subr.bf16.mxu0 0
    %359 = vmatpush1.bf16.msra.mxu0 0
    %360 = vmatprep.subr.bf16.mxu0 0
    %361 = vmatpush1.bf16.msra.mxu0 0
    %362 = vmatprep.subr.bf16.mxu0 0
    %363 = vmatpush1.bf16.msra.mxu0 0
    %364 = vmatprep.subr.bf16.mxu0 0
    %365 = vmatpush1.bf16.msra.mxu0 0
    %366 = vmatprep.mubr.bf16.mxu0 0
    %367 = vmatmul.mubr.bf16.gmra.mrb[0].mxu0 %v326
    %v368 = vpop.f32.mrb[0].mxu0
    %v369 = vadd.f32 %v82, %v368
    %v370 = vpop.f32.mrb[0].mxu0
    %v371 = vpop.f32.mrb[0].mxu0
    %v372 = vadd.f32 %v87, %v371
    %v373 = vpop.f32.mrb[0].mxu0
    %374 = vmatprep.mubr.bf16.mxu0 0
    %375 = vmatmul.mubr.bf16.gmra.mrb[0].mxu0 %v329
    %v376 = vpop.f32.mrb[0].mxu0
    %v377 = vadd.f32 %v92, %v376
    %v378 = vpop.f32.mrb[0].mxu0
    %v379 = vpop.f32.mrb[0].mxu0
    %v380 = vadd.f32 %v97, %v379
    %v381 = vpop.f32.mrb[0].mxu0
    %382 = vmatprep.mubr.bf16.mxu0 0
    %383 = vmatmul.mubr.bf16.gmra.mrb[0].mxu0 %v332
    %v384 = vpop.f32.mrb[0].mxu0
    %v385 = vadd.f32 %v102, %v384
    %v386 = vpop.f32.mrb[0].mxu0
    %v387 = vpop.f32.mrb[0].mxu0
    %v388 = vadd.f32 %v107, %v387
    %v389 = vpop.f32.mrb[0].mxu0
    %390 = vdwg.mxu0
    %v391 = vpack.c.bf16 %v372, %v369
    %v392 = vpack.c.bf16 %v380, %v377
    %v393 = vpack.c.bf16 %v388, %v385
    %397 = vrot.lane.b32.xlu0 %v300, 8
    %v398 = vpop.permute.xlu0 %397
    %399 = vrot.lane.b32.xlu0 %v301, 8
    %v400 = vpop.permute.xlu0 %399
    %401 = vrot.lane.b32.xlu0 %v302, 8
    %v402 = vpop.permute.xlu0 %401
    %406 = vrot.lane.b32.xlu0 %v391, 16
    %v407 = vpop.permute.xlu0 %406
    %408 = vrot.lane.b32.xlu0 %v392, 16
    %v409 = vpop.permute.xlu0 %408
    %410 = vrot.lane.b32.xlu0 %v393, 16
    %v411 = vpop.permute.xlu0 %410
    %415 = vrot.lane.b32.xlu0 %v209, 16
    %v416 = vpop.permute.xlu0 %415
    %417 = vrot.lane.b32.xlu0 %v210, 16
    %v418 = vpop.permute.xlu0 %417
    %419 = vrot.lane.b32.xlu0 %v211, 16
    %v420 = vpop.permute.xlu0 %419
    %421 = vrot.lane.b32.xlu0 %v300, 24
    %v422 = vpop.permute.xlu0 %421
    %423 = vrot.lane.b32.xlu0 %v301, 24
    %v424 = vpop.permute.xlu0 %423
    %425 = vrot.lane.b32.xlu0 %v302, 24
    %v426 = vpop.permute.xlu0 %425
    %427 = vrot.lane.b32.xlu0 %v391, 32
    %v428 = vpop.permute.xlu0 %427
    %429 = vrot.lane.b32.xlu0 %v392, 32
    %v430 = vpop.permute.xlu0 %429
    %431 = vrot.lane.b32.xlu0 %v393, 32
    %v432 = vpop.permute.xlu0 %431
    %vm433 = vcmask 64512
    %v436 = vsel %vm433, %v209, %v398
    %v439 = vsel %vm433, %v210, %v400
    %v442 = vsel %vm433, %v211, %v402
    %vm443 = vcmask 130048
    %v445 = vsel %vm443, %v436, %v407
    %v447 = vsel %vm443, %v439, %v409
    %v449 = vsel %vm443, %v442, %v411
    %vm450 = vcmask 195584
    %v452 = vsel %vm450, %v445, %v416
    %v454 = vsel %vm450, %v447, %v418
    %v456 = vsel %vm450, %v449, %v420
    %vm457 = vcmask 261120
    %v459 = vsel %vm457, %v452, %v422
    %v461 = vsel %vm457, %v454, %v424
    %v463 = vsel %vm457, %v456, %v426
    %vm464 = vcmask 326656
    %v466 = vsel %vm464, %v459, %v428
    %v468 = vsel %vm464, %v461, %v430
    %v470 = vsel %vm464, %v463, %v432
    %v471 = vld [vmem:[%s1] sm:$0xf]
    %v472 = vld [vmem:[%s1 + $0x4] sm:$0xf]
    %v473 = vld [vmem:[%s1 + $0x8] sm:$0xf]
    %v474 = vld [vmem:[%s1 + $0xc] sm:$0xf]
    %v479 = vunpack.c.l.b16 %v471
    %v480 = vunpack.c.l.b16 %v472
    %v481 = vunpack.c.l.b16 %v473
    %v482 = vunpack.c.l.b16 %v474
    %v483 = vpack.c.b16 %v480, %v479
    %v484 = vpack.c.b16 %v482, %v481
    %s485 = scalar_lea.vmem %s0, 24
    %v486 = vld [vmem:[%s485] sm:$0xf]
    %v487 = vld [vmem:[%s485 + $0x4] sm:$0xf]
    %v488 = vld [vmem:[%s485 + $0x8] sm:$0xf]
    %v489 = vld [vmem:[%s485 + $0xc] sm:$0xf]
    %v490 = vld [vmem:[%s485 + $0x10] sm:$0xf]
    %v491 = vld [vmem:[%s485 + $0x14] sm:$0xf]
    %v498 = vunpack.c.l.b16 %v486
    %v499 = vunpack.c.l.b16 %v487
    %v500 = vunpack.c.l.b16 %v488
    %v501 = vunpack.c.l.b16 %v489
    %v502 = vunpack.c.l.b16 %v490
    %v503 = vunpack.c.l.b16 %v491
    %v504 = vpack.c.b16 %v499, %v498
    %v505 = vpack.c.b16 %v501, %v500
    %v506 = vpack.c.b16 %v503, %v502
    %510 = vmatprep.subr.bf16.mxu0 0
    %511 = vmatpush1.bf16.msra.mxu0 %v504
    %512 = vmatprep.subr.bf16.mxu0 0
    %513 = vmatpush1.bf16.msra.mxu0 %v505
    %514 = vmatprep.subr.bf16.mxu0 0
    %515 = vmatpush1.bf16.msra.mxu0 %v506
    %516 = vmatprep.subr.bf16.mxu0 0
    %517 = vmatpush1.bf16.msra.mxu0 0
    %518 = vmatprep.subr.bf16.mxu0 0
    %519 = vmatpush1.bf16.msra.mxu0 0
    %520 = vmatprep.subr.bf16.mxu0 0
    %521 = vmatpush1.bf16.msra.mxu0 0
    %522 = vmatprep.subr.bf16.mxu0 0
    %523 = vmatpush1.bf16.msra.mxu0 0
    %524 = vmatprep.subr.bf16.mxu0 0
    %525 = vmatpush1.bf16.msra.mxu0 0
    %526 = vmatprep.subr.bf16.mxu0 0
    %527 = vmatpush1.bf16.msra.mxu0 0
    %528 = vmatprep.subr.bf16.mxu0 0
    %529 = vmatpush1.bf16.msra.mxu0 0
    %530 = vmatprep.subr.bf16.mxu0 0
    %531 = vmatpush1.bf16.msra.mxu0 0
    %532 = vmatprep.subr.bf16.mxu0 0
    %533 = vmatpush1.bf16.msra.mxu0 0
    %534 = vmatprep.subr.bf16.mxu0 0
    %535 = vmatpush1.bf16.msra.mxu0 0
    %536 = vmatprep.subr.bf16.mxu0 0
    %537 = vmatpush1.bf16.msra.mxu0 0
    %538 = vmatprep.subr.bf16.mxu0 0
    %539 = vmatpush1.bf16.msra.mxu0 0
    %540 = vmatprep.subr.bf16.mxu0 0
    %541 = vmatpush1.bf16.msra.mxu0 0
    %542 = vmatprep.mubr.bf16.mxu0 0
    %543 = vmatmul.mubr.bf16.gmra.mrb[0].mxu0 %v144
    %v544 = vpop.f32.mrb[0].mxu0
    %v545 = vadd.f32 %v82, %v544
    %v546 = vpop.f32.mrb[0].mxu0
    %v547 = vpop.f32.mrb[0].mxu0
    %v548 = vadd.f32 %v87, %v547
    %v549 = vpop.f32.mrb[0].mxu0
    %550 = vmatprep.mubr.bf16.mxu0 0
    %551 = vmatmul.mubr.bf16.gmra.mrb[0].mxu0 %v147
    %v552 = vpop.f32.mrb[0].mxu0
    %v553 = vadd.f32 %v92, %v552
    %v554 = vpop.f32.mrb[0].mxu0
    %v555 = vpop.f32.mrb[0].mxu0
    %v556 = vadd.f32 %v97, %v555
    %v557 = vpop.f32.mrb[0].mxu0
    %558 = vmatprep.mubr.bf16.mxu0 0
    %559 = vmatmul.mubr.bf16.gmra.mrb[0].mxu0 %v150
    %v560 = vpop.f32.mrb[0].mxu0
    %v561 = vadd.f32 %v102, %v560
    %v562 = vpop.f32.mrb[0].mxu0
    %v563 = vpop.f32.mrb[0].mxu0
    %v564 = vadd.f32 %v107, %v563
    %v565 = vpop.f32.mrb[0].mxu0
    %566 = vdwg.mxu0
    %v567 = vpack.c.bf16 %v548, %v545
    %v568 = vpack.c.bf16 %v556, %v553
    %v569 = vpack.c.bf16 %v564, %v561
    %570 = vmatprep.subr.bf16.mxu0 0
    %571 = vmatpush1.bf16.msra.mxu0 %v504
    %572 = vmatprep.subr.bf16.mxu0 0
    %573 = vmatpush1.bf16.msra.mxu0 %v505
    %574 = vmatprep.subr.bf16.mxu0 0
    %575 = vmatpush1.bf16.msra.mxu0 %v506
    %576 = vmatprep.subr.bf16.mxu0 0
    %577 = vmatpush1.bf16.msra.mxu0 0
    %578 = vmatprep.subr.bf16.mxu0 0
    %579 = vmatpush1.bf16.msra.mxu0 0
    %580 = vmatprep.subr.bf16.mxu0 0
    %581 = vmatpush1.bf16.msra.mxu0 0
    %582 = vmatprep.subr.bf16.mxu0 0
    %583 = vmatpush1.bf16.msra.mxu0 0
    %584 = vmatprep.subr.bf16.mxu0 0
    %585 = vmatpush1.bf16.msra.mxu0 0
    %586 = vmatprep.subr.bf16.mxu0 0
    %587 = vmatpush1.bf16.msra.mxu0 0
    %588 = vmatprep.subr.bf16.mxu0 0
    %589 = vmatpush1.bf16.msra.mxu0 0
    %590 = vmatprep.subr.bf16.mxu0 0
    %591 = vmatpush1.bf16.msra.mxu0 0
    %592 = vmatprep.subr.bf16.mxu0 0
    %593 = vmatpush1.bf16.msra.mxu0 0
    %594 = vmatprep.subr.bf16.mxu0 0
    %595 = vmatpush1.bf16.msra.mxu0 0
    %596 = vmatprep.subr.bf16.mxu0 0
    %597 = vmatpush1.bf16.msra.mxu0 0
    %598 = vmatprep.subr.bf16.mxu0 0
    %599 = vmatpush1.bf16.msra.mxu0 0
    %600 = vmatprep.subr.bf16.mxu0 0
    %601 = vmatpush1.bf16.msra.mxu0 0
    %602 = vmatprep.mubr.bf16.mxu0 0
    %603 = vmatmul.mubr.bf16.gmra.mrb[0].mxu0 %v235
    %v604 = vpop.f32.mrb[0].mxu0
    %v605 = vadd.f32 %v82, %v604
    %v606 = vpop.f32.mrb[0].mxu0
    %v607 = vpop.f32.mrb[0].mxu0
    %v608 = vadd.f32 %v87, %v607
    %v609 = vpop.f32.mrb[0].mxu0
    %610 = vmatprep.mubr.bf16.mxu0 0
    %611 = vmatmul.mubr.bf16.gmra.mrb[0].mxu0 %v238
    %v612 = vpop.f32.mrb[0].mxu0
    %v613 = vadd.f32 %v92, %v612
    %v614 = vpop.f32.mrb[0].mxu0
    %v615 = vpop.f32.mrb[0].mxu0
    %v616 = vadd.f32 %v97, %v615
    %v617 = vpop.f32.mrb[0].mxu0
    %618 = vmatprep.mubr.bf16.mxu0 0
    %619 = vmatmul.mubr.bf16.gmra.mrb[0].mxu0 %v241
    %v620 = vpop.f32.mrb[0].mxu0
    %v621 = vadd.f32 %v102, %v620
    %v622 = vpop.f32.mrb[0].mxu0
    %v623 = vpop.f32.mrb[0].mxu0
    %v624 = vadd.f32 %v107, %v623
    %v625 = vpop.f32.mrb[0].mxu0
    %626 = vdwg.mxu0
    %v627 = vpack.c.bf16 %v608, %v605
    %v628 = vpack.c.bf16 %v616, %v613
    %v629 = vpack.c.bf16 %v624, %v621
    %630 = vmatprep.subr.bf16.mxu0 0
    %631 = vmatpush1.bf16.msra.mxu0 %v504
    %632 = vmatprep.subr.bf16.mxu0 0
    %633 = vmatpush1.bf16.msra.mxu0 %v505
    %634 = vmatprep.subr.bf16.mxu0 0
    %635 = vmatpush1.bf16.msra.mxu0 %v506
    %636 = vmatprep.subr.bf16.mxu0 0
    %637 = vmatpush1.bf16.msra.mxu0 0
    %638 = vmatprep.subr.bf16.mxu0 0
    %639 = vmatpush1.bf16.msra.mxu0 0
    %640 = vmatprep.subr.bf16.mxu0 0
    %641 = vmatpush1.bf16.msra.mxu0 0
    %642 = vmatprep.subr.bf16.mxu0 0
    %643 = vmatpush1.bf16.msra.mxu0 0
    %644 = vmatprep.subr.bf16.mxu0 0
    %645 = vmatpush1.bf16.msra.mxu0 0
    %646 = vmatprep.subr.bf16.mxu0 0
    %647 = vmatpush1.bf16.msra.mxu0 0
    %648 = vmatprep.subr.bf16.mxu0 0
    %649 = vmatpush1.bf16.msra.mxu0 0
    %650 = vmatprep.subr.bf16.mxu0 0
    %651 = vmatpush1.bf16.msra.mxu0 0
    %652 = vmatprep.subr.bf16.mxu0 0
    %653 = vmatpush1.bf16.msra.mxu0 0
    %654 = vmatprep.subr.bf16.mxu0 0
    %655 = vmatpush1.bf16.msra.mxu0 0
    %656 = vmatprep.subr.bf16.mxu0 0
    %657 = vmatpush1.bf16.msra.mxu0 0
    %658 = vmatprep.subr.bf16.mxu0 0
    %659 = vmatpush1.bf16.msra.mxu0 0
    %660 = vmatprep.subr.bf16.mxu0 0
    %661 = vmatpush1.bf16.msra.mxu0 0
    %662 = vmatprep.mubr.bf16.mxu0 0
    %663 = vmatmul.mubr.bf16.gmra.mrb[0].mxu0 %v326
    %v664 = vpop.f32.mrb[0].mxu0
    %v665 = vadd.f32 %v82, %v664
    %v666 = vpop.f32.mrb[0].mxu0
    %v667 = vpop.f32.mrb[0].mxu0
    %v668 = vadd.f32 %v87, %v667
    %v669 = vpop.f32.mrb[0].mxu0
    %670 = vmatprep.mubr.bf16.mxu0 0
    %671 = vmatmul.mubr.bf16.gmra.mrb[0].mxu0 %v329
    %v672 = vpop.f32.mrb[0].mxu0
    %v673 = vadd.f32 %v92, %v672
    %v674 = vpop.f32.mrb[0].mxu0
    %v675 = vpop.f32.mrb[0].mxu0
    %v676 = vadd.f32 %v97, %v675
    %v677 = vpop.f32.mrb[0].mxu0
    %678 = vmatprep.mubr.bf16.mxu0 0
    %679 = vmatmul.mubr.bf16.gmra.mrb[0].mxu0 %v332
    %v680 = vpop.f32.mrb[0].mxu0
    %v681 = vadd.f32 %v102, %v680
    %v682 = vpop.f32.mrb[0].mxu0
    %v683 = vpop.f32.mrb[0].mxu0
    %v684 = vadd.f32 %v107, %v683
    %v685 = vpop.f32.mrb[0].mxu0
    %686 = vdwg.mxu0
    %v687 = vpack.c.bf16 %v668, %v665
    %v688 = vpack.c.bf16 %v676, %v673
    %v689 = vpack.c.bf16 %v684, %v681
    %693 = vrot.lane.b32.xlu0 %v627, 8
    %v694 = vpop.permute.xlu0 %693
    %695 = vrot.lane.b32.xlu0 %v628, 8
    %v696 = vpop.permute.xlu0 %695
    %697 = vrot.lane.b32.xlu0 %v629, 8
    %v698 = vpop.permute.xlu0 %697
    %702 = vrot.lane.b32.xlu0 %v687, 16
    %v703 = vpop.permute.xlu0 %702
    %704 = vrot.lane.b32.xlu0 %v688, 16
    %v705 = vpop.permute.xlu0 %704
    %706 = vrot.lane.b32.xlu0 %v689, 16
    %v707 = vpop.permute.xlu0 %706
    %711 = vrot.lane.b32.xlu0 %v567, 16
    %v712 = vpop.permute.xlu0 %711
    %713 = vrot.lane.b32.xlu0 %v568, 16
    %v714 = vpop.permute.xlu0 %713
    %715 = vrot.lane.b32.xlu0 %v569, 16
    %v716 = vpop.permute.xlu0 %715
    %717 = vrot.lane.b32.xlu0 %v627, 24
    %v718 = vpop.permute.xlu0 %717
    %719 = vrot.lane.b32.xlu0 %v628, 24
    %v720 = vpop.permute.xlu0 %719
    %721 = vrot.lane.b32.xlu0 %v629, 24
    %v722 = vpop.permute.xlu0 %721
    %723 = vrot.lane.b32.xlu0 %v687, 32
    %v724 = vpop.permute.xlu0 %723
    %725 = vrot.lane.b32.xlu0 %v688, 32
    %v726 = vpop.permute.xlu0 %725
    %727 = vrot.lane.b32.xlu0 %v689, 32
    %v728 = vpop.permute.xlu0 %727
    %v731 = vsel %vm433, %v567, %v694
    %v734 = vsel %vm433, %v568, %v696
    %v737 = vsel %vm433, %v569, %v698
    %v739 = vsel %vm443, %v731, %v703
    %v741 = vsel %vm443, %v734, %v705
    %v743 = vsel %vm443, %v737, %v707
    %v745 = vsel %vm450, %v739, %v712
    %v747 = vsel %vm450, %v741, %v714
    %v749 = vsel %vm450, %v743, %v716
    %v751 = vsel %vm457, %v745, %v718
    %v753 = vsel %vm457, %v747, %v720
    %v755 = vsel %vm457, %v749, %v722
    %v757 = vsel %vm464, %v751, %v724
    %v759 = vsel %vm464, %v753, %v726
    %v761 = vsel %vm464, %v755, %v728
    %s762 = scalar_lea.vmem %s1, 16
    %v763 = vld [vmem:[%s762] sm:$0xf]
    %v764 = vld [vmem:[%s762 + $0x4] sm:$0xf]
    %v765 = vld [vmem:[%s762 + $0x8] sm:$0xf]
    %v766 = vld [vmem:[%s762 + $0xc] sm:$0xf]
    %v771 = vunpack.c.l.b16 %v763
    %v772 = vunpack.c.l.b16 %v764
    %v773 = vunpack.c.l.b16 %v765
    %v774 = vunpack.c.l.b16 %v766
    %v775 = vpack.c.b16 %v772, %v771
    %v776 = vpack.c.b16 %v774, %v773
    %780 = vrot.lane.b32.xlu0 %v757, 48
    %v781 = vpop.permute.xlu0 %780
    %782 = vrot.lane.b32.xlu0 %v759, 48
    %v783 = vpop.permute.xlu0 %782
    %784 = vrot.lane.b32.xlu0 %v761, 48
    %v785 = vpop.permute.xlu0 %784
    %786 = vrot.lane.b32.xlu0 %v775, 48
    %v787 = vpop.permute.xlu0 %786
    %788 = vrot.lane.b32.xlu0 %v776, 48
    %v789 = vpop.permute.xlu0 %788
    %v791 = vsel %vm142, %v466, %v781
    %v794 = vsel %vm142, %v468, %v783
    %v797 = vsel %vm142, %v470, %v785
    %v801 = vsel %vm142, %v483, %v787
    %v805 = vsel %vm142, %v484, %v789
    %v807 = vld [vmem:[%s4] sm:$0xff]
    %v808 = vld [vmem:[%s4 + $0x8] sm:$0xff]
    %v809 = vld [vmem:[%s4 + $0x10] sm:$0xff]
    %v810 = vld [vmem:[%s4 + $0x18] sm:$0xff]
    %v811 = vld [vmem:[%s4 + $0x20] sm:$0xff]
    %v812 = vld [vmem:[%s4 + $0x28] sm:$0xff]
    %v813 = vld [vmem:[%s4 + $0x30] sm:$0xff]
    %v814 = vld [vmem:[%s4 + $0x38] sm:$0xff]
    %v815 = vld [vmem:[%s4 + $0x40] sm:$0xff]
    %v816 = vld [vmem:[%s4 + $0x48] sm:$0xff]
    %v817 = vld [vmem:[%s4 + $0x50] sm:$0xff]
    %v818 = vld [vmem:[%s4 + $0x58] sm:$0xff]
    %v819 = vld [vmem:[%s4 + $0x60] sm:$0xff]
    %v820 = vld [vmem:[%s4 + $0x68] sm:$0xff]
    %v821 = vld [vmem:[%s4 + $0x70] sm:$0xff]
    %827 = vrot.lane.b32.xlu0 %v791, 41
    %v828 = vpop.permute.xlu0 %827
    %829 = vrot.lane.b32.xlu0 %v794, 41
    %v830 = vpop.permute.xlu0 %829
    %831 = vrot.lane.b32.xlu0 %v797, 41
    %v832 = vpop.permute.xlu0 %831
    %833 = vrot.lane.b32.xlu0 %v801, 41
    %v834 = vpop.permute.xlu0 %833
    %835 = vrot.lane.b32.xlu0 %v805, 41
    %v836 = vpop.permute.xlu0 %835
    %837 = vrot.lane.b32.xlu0 %v791, 9
    %v838 = vpop.permute.xlu0 %837
    %839 = vrot.lane.b32.xlu0 %v794, 9
    %v840 = vpop.permute.xlu0 %839
    %841 = vrot.lane.b32.xlu0 %v797, 9
    %v842 = vpop.permute.xlu0 %841
    %843 = vrot.lane.b32.xlu0 %v801, 9
    %v844 = vpop.permute.xlu0 %843
    %845 = vrot.lane.b32.xlu0 %v805, 9
    %v846 = vpop.permute.xlu0 %845
    %vm847 = vcmask 72704
    %v850 = vsel %vm847, %v828, %v838
    %v854 = vsel %vm847, %v830, %v840
    %v858 = vsel %vm847, %v832, %v842
    %v862 = vsel %vm847, %v834, %v844
    %v866 = vsel %vm847, %v836, %v846
    %v869 = vpack.i.b16 %v46, %v46
    %v871 = vlaneseq
    %v872 = vshrl.u32 %v871, 7
    %v873 = vsub.s32 0, %v872
    %v874 = vrot.slane %v869, %v873
    %v875 = vmul.bf16 %v850, %v874
    %v876 = vmul.bf16 %v854, %v874
    %v877 = vmul.bf16 %v858, %v874
    %v878 = vmul.bf16 %v862, %v874
    %v879 = vmul.bf16 %v866, %v874
    %880 = vrot.lane.b32.xlu0 %v791, 40
    %v881 = vpop.permute.xlu0 %880
    %882 = vrot.lane.b32.xlu0 %v794, 40
    %v883 = vpop.permute.xlu0 %882
    %884 = vrot.lane.b32.xlu0 %v797, 40
    %v885 = vpop.permute.xlu0 %884
    %886 = vrot.lane.b32.xlu0 %v801, 40
    %v887 = vpop.permute.xlu0 %886
    %888 = vrot.lane.b32.xlu0 %v805, 40
    %v889 = vpop.permute.xlu0 %888
    %890 = vrot.lane.b32.xlu0 %v791, 8
    %v891 = vpop.permute.xlu0 %890
    %892 = vrot.lane.b32.xlu0 %v794, 8
    %v893 = vpop.permute.xlu0 %892
    %894 = vrot.lane.b32.xlu0 %v797, 8
    %v895 = vpop.permute.xlu0 %894
    %896 = vrot.lane.b32.xlu0 %v801, 8
    %v897 = vpop.permute.xlu0 %896
    %898 = vrot.lane.b32.xlu0 %v805, 8
    %v899 = vpop.permute.xlu0 %898
    %v902 = vsel %vm433, %v881, %v891
    %v906 = vsel %vm433, %v883, %v893
    %v910 = vsel %vm433, %v885, %v895
    %v914 = vsel %vm433, %v887, %v897
    %v918 = vsel %vm433, %v889, %v899
    %v921 = vpack.i.b16 %v48, %v48
    %v923 = vlaneseq
    %v924 = vshrl.u32 %v923, 7
    %v925 = vsub.s32 0, %v924
    %v926 = vrot.slane %v921, %v925
    %v927 = vmul.bf16 %v902, %v926
    %v928 = vmul.bf16 %v906, %v926
    %v929 = vmul.bf16 %v910, %v926
    %v930 = vmul.bf16 %v914, %v926
    %v931 = vmul.bf16 %v918, %v926
    %932 = vrot.lane.b32.xlu0 %v791, 39
    %v933 = vpop.permute.xlu0 %932
    %934 = vrot.lane.b32.xlu0 %v794, 39
    %v935 = vpop.permute.xlu0 %934
    %936 = vrot.lane.b32.xlu0 %v797, 39
    %v937 = vpop.permute.xlu0 %936
    %938 = vrot.lane.b32.xlu0 %v801, 39
    %v939 = vpop.permute.xlu0 %938
    %940 = vrot.lane.b32.xlu0 %v805, 39
    %v941 = vpop.permute.xlu0 %940
    %942 = vrot.lane.b32.xlu0 %v791, 7
    %v943 = vpop.permute.xlu0 %942
    %944 = vrot.lane.b32.xlu0 %v794, 7
    %v945 = vpop.permute.xlu0 %944
    %946 = vrot.lane.b32.xlu0 %v797, 7
    %v947 = vpop.permute.xlu0 %946
    %948 = vrot.lane.b32.xlu0 %v801, 7
    %v949 = vpop.permute.xlu0 %948
    %950 = vrot.lane.b32.xlu0 %v805, 7
    %v951 = vpop.permute.xlu0 %950
    %vm952 = vcmask 56320
    %v955 = vsel %vm952, %v933, %v943
    %v959 = vsel %vm952, %v935, %v945
    %v963 = vsel %vm952, %v937, %v947
    %v967 = vsel %vm952, %v939, %v949
    %v971 = vsel %vm952, %v941, %v951
    %v974 = vpack.i.b16 %v50, %v50
    %v976 = vlaneseq
    %v977 = vshrl.u32 %v976, 7
    %v978 = vsub.s32 0, %v977
    %v979 = vrot.slane %v974, %v978
    %v980 = vmul.bf16 %v955, %v979
    %v981 = vmul.bf16 %v959, %v979
    %v982 = vmul.bf16 %v963, %v979
    %v983 = vmul.bf16 %v967, %v979
    %v984 = vmul.bf16 %v971, %v979
    %985 = vrot.lane.b32.xlu0 %v791, 33
    %v986 = vpop.permute.xlu0 %985
    %987 = vrot.lane.b32.xlu0 %v794, 33
    %v988 = vpop.permute.xlu0 %987
    %989 = vrot.lane.b32.xlu0 %v797, 33
    %v990 = vpop.permute.xlu0 %989
    %991 = vrot.lane.b32.xlu0 %v801, 33
    %v992 = vpop.permute.xlu0 %991
    %993 = vrot.lane.b32.xlu0 %v805, 33
    %v994 = vpop.permute.xlu0 %993
    %995 = vrot.lane.b32.xlu0 %v791, 1
    %v996 = vpop.permute.xlu0 %995
    %997 = vrot.lane.b32.xlu0 %v794, 1
    %v998 = vpop.permute.xlu0 %997
    %999 = vrot.lane.b32.xlu0 %v797, 1
    %v1000 = vpop.permute.xlu0 %999
    %1001 = vrot.lane.b32.xlu0 %v801, 1
    %v1002 = vpop.permute.xlu0 %1001
    %1003 = vrot.lane.b32.xlu0 %v805, 1
    %v1004 = vpop.permute.xlu0 %1003
    %vm1005 = vcmask 7168
    %v1008 = vsel %vm1005, %v986, %v996
    %v1012 = vsel %vm1005, %v988, %v998
    %v1016 = vsel %vm1005, %v990, %v1000
    %v1020 = vsel %vm1005, %v992, %v1002
    %v1024 = vsel %vm1005, %v994, %v1004
    %v1027 = vpack.i.b16 %v52, %v52
    %v1029 = vlaneseq
    %v1030 = vshrl.u32 %v1029, 7
    %v1031 = vsub.s32 0, %v1030
    %v1032 = vrot.slane %v1027, %v1031
    %v1033 = vmul.bf16 %v1008, %v1032
    %v1034 = vmul.bf16 %v1012, %v1032
    %v1035 = vmul.bf16 %v1016, %v1032
    %v1036 = vmul.bf16 %v1020, %v1032
    %v1037 = vmul.bf16 %v1024, %v1032
    %1038 = vrot.lane.b32.xlu0 %v791, 127
    %v1039 = vpop.permute.xlu0 %1038
    %1040 = vrot.lane.b32.xlu0 %v794, 127
    %v1041 = vpop.permute.xlu0 %1040
    %1042 = vrot.lane.b32.xlu0 %v797, 127
    %v1043 = vpop.permute.xlu0 %1042
    %1044 = vrot.lane.b32.xlu0 %v801, 127
    %v1045 = vpop.permute.xlu0 %1044
    %1046 = vrot.lane.b32.xlu0 %v805, 127
    %v1047 = vpop.permute.xlu0 %1046
    %1048 = vrot.lane.b32.xlu0 %v791, 95
    %v1049 = vpop.permute.xlu0 %1048
    %1050 = vrot.lane.b32.xlu0 %v794, 95
    %v1051 = vpop.permute.xlu0 %1050
    %1052 = vrot.lane.b32.xlu0 %v797, 95
    %v1053 = vpop.permute.xlu0 %1052
    %1054 = vrot.lane.b32.xlu0 %v801, 95
    %v1055 = vpop.permute.xlu0 %1054
    %1056 = vrot.lane.b32.xlu0 %v805, 95
    %v1057 = vpop.permute.xlu0 %1056
    %vm1058 = vcmask 777216
    %v1061 = vsel %vm1058, %v1039, %v1049
    %v1065 = vsel %vm1058, %v1041, %v1051
    %v1069 = vsel %vm1058, %v1043, %v1053
    %v1073 = vsel %vm1058, %v1045, %v1055
    %v1077 = vsel %vm1058, %v1047, %v1057
    %v1080 = vpack.i.b16 %v54, %v54
    %v1082 = vlaneseq
    %v1083 = vshrl.u32 %v1082, 7
    %v1084 = vsub.s32 0, %v1083
    %v1085 = vrot.slane %v1080, %v1084
    %v1086 = vmul.bf16 %v1061, %v1085
    %v1087 = vmul.bf16 %v1065, %v1085
    %v1088 = vmul.bf16 %v1069, %v1085
    %v1089 = vmul.bf16 %v1073, %v1085
    %v1090 = vmul.bf16 %v1077, %v1085
    %1091 = vrot.lane.b32.xlu0 %v791, 121
    %v1092 = vpop.permute.xlu0 %1091
    %1093 = vrot.lane.b32.xlu0 %v794, 121
    %v1094 = vpop.permute.xlu0 %1093
    %1095 = vrot.lane.b32.xlu0 %v797, 121
    %v1096 = vpop.permute.xlu0 %1095
    %1097 = vrot.lane.b32.xlu0 %v801, 121
    %v1098 = vpop.permute.xlu0 %1097
    %1099 = vrot.lane.b32.xlu0 %v805, 121
    %v1100 = vpop.permute.xlu0 %1099
    %1101 = vrot.lane.b32.xlu0 %v791, 89
    %v1102 = vpop.permute.xlu0 %1101
    %1103 = vrot.lane.b32.xlu0 %v794, 89
    %v1104 = vpop.permute.xlu0 %1103
    %1105 = vrot.lane.b32.xlu0 %v797, 89
    %v1106 = vpop.permute.xlu0 %1105
    %1107 = vrot.lane.b32.xlu0 %v801, 89
    %v1108 = vpop.permute.xlu0 %1107
    %1109 = vrot.lane.b32.xlu0 %v805, 89
    %v1110 = vpop.permute.xlu0 %1109
    %vm1111 = vcmask 728064
    %v1114 = vsel %vm1111, %v1092, %v1102
    %v1118 = vsel %vm1111, %v1094, %v1104
    %v1122 = vsel %vm1111, %v1096, %v1106
    %v1126 = vsel %vm1111, %v1098, %v1108
    %v1130 = vsel %vm1111, %v1100, %v1110
    %v1133 = vpack.i.b16 %v56, %v56
    %v1135 = vlaneseq
    %v1136 = vshrl.u32 %v1135, 7
    %v1137 = vsub.s32 0, %v1136
    %v1138 = vrot.slane %v1133, %v1137
    %v1139 = vmul.bf16 %v1114, %v1138
    %v1140 = vmul.bf16 %v1118, %v1138
    %v1141 = vmul.bf16 %v1122, %v1138
    %v1142 = vmul.bf16 %v1126, %v1138
    %v1143 = vmul.bf16 %v1130, %v1138
    %1144 = vrot.lane.b32.xlu0 %v791, 120
    %v1145 = vpop.permute.xlu0 %1144
    %1146 = vrot.lane.b32.xlu0 %v794, 120
    %v1147 = vpop.permute.xlu0 %1146
    %1148 = vrot.lane.b32.xlu0 %v797, 120
    %v1149 = vpop.permute.xlu0 %1148
    %1150 = vrot.lane.b32.xlu0 %v801, 120
    %v1151 = vpop.permute.xlu0 %1150
    %1152 = vrot.lane.b32.xlu0 %v805, 120
    %v1153 = vpop.permute.xlu0 %1152
    %1154 = vrot.lane.b32.xlu0 %v791, 88
    %v1155 = vpop.permute.xlu0 %1154
    %1156 = vrot.lane.b32.xlu0 %v794, 88
    %v1157 = vpop.permute.xlu0 %1156
    %1158 = vrot.lane.b32.xlu0 %v797, 88
    %v1159 = vpop.permute.xlu0 %1158
    %1160 = vrot.lane.b32.xlu0 %v801, 88
    %v1161 = vpop.permute.xlu0 %1160
    %1162 = vrot.lane.b32.xlu0 %v805, 88
    %v1163 = vpop.permute.xlu0 %1162
    %vm1164 = vcmask 719872
    %v1167 = vsel %vm1164, %v1145, %v1155
    %v1171 = vsel %vm1164, %v1147, %v1157
    %v1175 = vsel %vm1164, %v1149, %v1159
    %v1179 = vsel %vm1164, %v1151, %v1161
    %v1183 = vsel %vm1164, %v1153, %v1163
    %v1186 = vpack.i.b16 %v58, %v58
    %v1188 = vlaneseq
    %v1189 = vshrl.u32 %v1188, 7
    %v1190 = vsub.s32 0, %v1189
    %v1191 = vrot.slane %v1186, %v1190
    %v1192 = vmul.bf16 %v1167, %v1191
    %v1193 = vmul.bf16 %v1171, %v1191
    %v1194 = vmul.bf16 %v1175, %v1191
    %v1195 = vmul.bf16 %v1179, %v1191
    %v1196 = vmul.bf16 %v1183, %v1191
    %1197 = vrot.lane.b32.xlu0 %v791, 119
    %v1198 = vpop.permute.xlu0 %1197
    %1199 = vrot.lane.b32.xlu0 %v794, 119
    %v1200 = vpop.permute.xlu0 %1199
    %1201 = vrot.lane.b32.xlu0 %v797, 119
    %v1202 = vpop.permute.xlu0 %1201
    %1203 = vrot.lane.b32.xlu0 %v801, 119
    %v1204 = vpop.permute.xlu0 %1203
    %1205 = vrot.lane.b32.xlu0 %v805, 119
    %v1206 = vpop.permute.xlu0 %1205
    %1207 = vrot.lane.b32.xlu0 %v791, 87
    %v1208 = vpop.permute.xlu0 %1207
    %1209 = vrot.lane.b32.xlu0 %v794, 87
    %v1210 = vpop.permute.xlu0 %1209
    %1211 = vrot.lane.b32.xlu0 %v797, 87
    %v1212 = vpop.permute.xlu0 %1211
    %1213 = vrot.lane.b32.xlu0 %v801, 87
    %v1214 = vpop.permute.xlu0 %1213
    %1215 = vrot.lane.b32.xlu0 %v805, 87
    %v1216 = vpop.permute.xlu0 %1215
    %vm1217 = vcmask 711680
    %v1220 = vsel %vm1217, %v1198, %v1208
    %v1224 = vsel %vm1217, %v1200, %v1210
    %v1228 = vsel %vm1217, %v1202, %v1212
    %v1232 = vsel %vm1217, %v1204, %v1214
    %v1236 = vsel %vm1217, %v1206, %v1216
    %v1239 = vpack.i.b16 %v60, %v60
    %v1241 = vlaneseq
    %v1242 = vshrl.u32 %v1241, 7
    %v1243 = vsub.s32 0, %v1242
    %v1244 = vrot.slane %v1239, %v1243
    %v1245 = vmul.bf16 %v1220, %v1244
    %v1246 = vmul.bf16 %v1224, %v1244
    %v1247 = vmul.bf16 %v1228, %v1244
    %v1248 = vmul.bf16 %v1232, %v1244
    %v1249 = vmul.bf16 %v1236, %v1244
    %v1250 = vld [vmem:[%s5] sm:$0xff]
    %v1251 = vld [vmem:[%s5 + $0x8] sm:$0xff]
    %v1252 = vld [vmem:[%s5 + $0x10] sm:$0xff]
    %v1253 = vld [vmem:[%s5 + $0x18] sm:$0xff]
    %v1254 = vld [vmem:[%s5 + $0x20] sm:$0xff]
    %1256 = vset.pattern.permute.xlu0 0
    %1257 = vperm.xlu0 %1256, %v1250
    %v1258 = vpop.permute.xlu0 %1257
    %1261 = vset.pattern.permute.xlu0 0
    %1262 = vperm.xlu0 %1261, %v1251
    %v1263 = vpop.permute.xlu0 %1262
    %1266 = vset.pattern.permute.xlu0 0
    %1267 = vperm.xlu0 %1266, %v1252
    %v1268 = vpop.permute.xlu0 %1267
    %1271 = vset.pattern.permute.xlu0 0
    %1272 = vperm.xlu0 %1271, %v1253
    %v1273 = vpop.permute.xlu0 %1272
    %1276 = vset.pattern.permute.xlu0 0
    %1277 = vperm.xlu0 %1276, %v1254
    %v1278 = vpop.permute.xlu0 %1277
    %v1295 = vunpack.c.l.b16 %v807
    %v1296 = vunpack.c.h.b16 %v807
    %v1297 = vunpack.c.l.b16 %v808
    %v1298 = vunpack.c.h.b16 %v808
    %v1299 = vunpack.c.l.b16 %v809
    %v1300 = vunpack.c.h.b16 %v809
    %v1301 = vunpack.c.l.b16 %v810
    %v1302 = vunpack.c.h.b16 %v810
    %v1303 = vunpack.c.l.b16 %v811
    %v1304 = vunpack.c.h.b16 %v811
    %v1305 = vunpack.c.l.b16 %v812
    %v1306 = vunpack.c.h.b16 %v812
    %v1307 = vunpack.c.l.b16 %v813
    %v1308 = vunpack.c.h.b16 %v813
    %v1309 = vunpack.c.l.b16 %v814
    %v1310 = vunpack.c.h.b16 %v814
    %v1311 = vunpack.c.l.b16 %v815
    %v1312 = vunpack.c.h.b16 %v815
    %v1313 = vunpack.c.l.b16 %v816
    %v1314 = vunpack.c.h.b16 %v816
    %v1315 = vunpack.c.l.b16 %v817
    %v1316 = vunpack.c.h.b16 %v817
    %v1317 = vunpack.c.l.b16 %v818
    %v1318 = vunpack.c.h.b16 %v818
    %v1319 = vunpack.c.l.b16 %v819
    %v1320 = vunpack.c.h.b16 %v819
    %v1321 = vunpack.c.l.b16 %v820
    %v1322 = vunpack.c.h.b16 %v820
    %v1323 = vunpack.c.l.b16 %v821
    %v1324 = vunpack.c.h.b16 %v821
    %v1325 = vpack.c.b16 %v1301, %v1295
    %v1326 = vpack.c.b16 %v1302, %v1296
    %v1327 = vpack.c.b16 %v1303, %v1297
    %v1328 = vpack.c.b16 %v1304, %v1298
    %v1329 = vpack.c.b16 %v1305, %v1299
    %v1330 = vpack.c.b16 %v1306, %v1300
    %v1331 = vpack.c.b16 %v1313, %v1307
    %v1332 = vpack.c.b16 %v1314, %v1308
    %v1333 = vpack.c.b16 %v1315, %v1309
    %v1334 = vpack.c.b16 %v1316, %v1310
    %v1335 = vpack.c.b16 %v1317, %v1311
    %v1336 = vpack.c.b16 %v1318, %v1312
    %v1337 = vpack.c.b16 %v1319, %v1319
    %v1338 = vpack.c.b16 %v1320, %v1320
    %v1339 = vpack.c.b16 %v1321, %v1321
    %v1340 = vpack.c.b16 %v1322, %v1322
    %v1341 = vpack.c.b16 %v1323, %v1323
    %v1342 = vpack.c.b16 %v1324, %v1324
    %vm1358 = vcmask 654336
    %v1360 = vsel %vm1358, %v1330, 0
    %v1363 = vsel %vm1358, %v1336, 0
    %v1366 = vsel %vm1358, %v1342, 0
    %1368 = vmatprep.subr.bf16.mxu0 0
    %1369 = vmatpush1.bf16.msra.mxu0 %v875
    %1370 = vmatprep.subr.bf16.mxu0 0
    %1371 = vmatpush1.bf16.msra.mxu0 %v876
    %1372 = vmatprep.subr.bf16.mxu0 0
    %1373 = vmatpush1.bf16.msra.mxu0 %v877
    %1374 = vmatprep.subr.bf16.mxu0 0
    %1375 = vmatpush1.bf16.msra.mxu0 %v878
    %1376 = vmatprep.subr.bf16.mxu0 0
    %1377 = vmatpush1.bf16.msra.mxu0 %v879
    %1378 = vmatprep.subr.bf16.mxu0 0
    %1379 = vmatpush1.bf16.msra.mxu0 %v927
    %1380 = vmatprep.subr.bf16.mxu0 0
    %1381 = vmatpush1.bf16.msra.mxu0 %v928
    %1382 = vmatprep.subr.bf16.mxu0 0
    %1383 = vmatpush1.bf16.msra.mxu0 %v929
    %1384 = vmatprep.subr.bf16.mxu0 0
    %1385 = vmatpush1.bf16.msra.mxu0 %v930
    %1386 = vmatprep.subr.bf16.mxu0 0
    %1387 = vmatpush1.bf16.msra.mxu0 %v931
    %1388 = vmatprep.subr.bf16.mxu0 0
    %1389 = vmatpush1.bf16.msra.mxu0 %v980
    %1390 = vmatprep.subr.bf16.mxu0 0
    %1391 = vmatpush1.bf16.msra.mxu0 %v981
    %1392 = vmatprep.subr.bf16.mxu0 0
    %1393 = vmatpush1.bf16.msra.mxu0 %v982
    %1394 = vmatprep.subr.bf16.mxu0 0
    %1395 = vmatpush1.bf16.msra.mxu0 %v983
    %1396 = vmatprep.subr.bf16.mxu0 0
    %1397 = vmatpush1.bf16.msra.mxu0 %v984
    %1398 = vmatprep.subr.bf16.mxu0 0
    %1399 = vmatpush1.bf16.msra.mxu0 %v1033
    %1400 = vmatprep.mubr.bf16.mxu0 %v1326
    %1401 = vmatmul.mubr.bf16.gmra.mrb[0].mxu0 %v1325
    %v1402 = vpop.f32.mrb[0].mxu0
    %v1403 = vadd.f32 %v1258, %v1402
    %v1404 = vpop.f32.mrb[0].mxu0
    %v1405 = vpop.f32.mrb[0].mxu0
    %v1406 = vadd.f32 %v1263, %v1405
    %v1407 = vpop.f32.mrb[0].mxu0
    %1408 = vmatprep.mubr.bf16.mxu0 %v1332
    %1409 = vmatmul.mubr.bf16.gmra.mrb[0].mxu0 %v1331
    %v1410 = vpop.f32.mrb[0].mxu0
    %v1411 = vadd.f32 %v1268, %v1410
    %v1412 = vpop.f32.mrb[0].mxu0
    %v1413 = vpop.f32.mrb[0].mxu0
    %v1414 = vadd.f32 %v1273, %v1413
    %v1415 = vpop.f32.mrb[0].mxu0
    %1416 = vmatprep.mubr.bf16.mxu0 %v1338
    %1417 = vmatmul.mubr.bf16.gmra.mrb[0].mxu0 %v1337
    %v1418 = vpop.f32.mrb[0].mxu0
    %v1419 = vadd.f32 %v1278, %v1418
    %v1420 = vpop.f32.mrb[0].mxu0
    %v1421 = vpop.f32.mrb[0].mxu0
    %v1422 = vpop.f32.mrb[0].mxu0
    %1423 = vdwg.mxu0
    %1424 = vmatprep.subr.bf16.mxu0 0
    %1425 = vmatpush1.bf16.msra.mxu0 %v1034
    %1426 = vmatprep.subr.bf16.mxu0 0
    %1427 = vmatpush1.bf16.msra.mxu0 %v1035
    %1428 = vmatprep.subr.bf16.mxu0 0
    %1429 = vmatpush1.bf16.msra.mxu0 %v1036
    %1430 = vmatprep.subr.bf16.mxu0 0
    %1431 = vmatpush1.bf16.msra.mxu0 %v1037
    %1432 = vmatprep.subr.bf16.mxu0 0
    %1433 = vmatpush1.bf16.msra.mxu0 %v791
    %1434 = vmatprep.subr.bf16.mxu0 0
    %1435 = vmatpush1.bf16.msra.mxu0 %v794
    %1436 = vmatprep.subr.bf16.mxu0 0
    %1437 = vmatpush1.bf16.msra.mxu0 %v797
    %1438 = vmatprep.subr.bf16.mxu0 0
    %1439 = vmatpush1.bf16.msra.mxu0 %v801
    %1440 = vmatprep.subr.bf16.mxu0 0
    %1441 = vmatpush1.bf16.msra.mxu0 %v805
    %1442 = vmatprep.subr.bf16.mxu0 0
    %1443 = vmatpush1.bf16.msra.mxu0 %v1086
    %1444 = vmatprep.subr.bf16.mxu0 0
    %1445 = vmatpush1.bf16.msra.mxu0 %v1087
    %1446 = vmatprep.subr.bf16.mxu0 0
    %1447 = vmatpush1.bf16.msra.mxu0 %v1088
    %1448 = vmatprep.subr.bf16.mxu0 0
    %1449 = vmatpush1.bf16.msra.mxu0 %v1089
    %1450 = vmatprep.subr.bf16.mxu0 0
    %1451 = vmatpush1.bf16.msra.mxu0 %v1090
    %1452 = vmatprep.subr.bf16.mxu0 0
    %1453 = vmatpush1.bf16.msra.mxu0 %v1139
    %1454 = vmatprep.subr.bf16.mxu0 0
    %1455 = vmatpush1.bf16.msra.mxu0 %v1140
    %1456 = vmatprep.mubr.bf16.mxu0 %v1328
    %1457 = vmatmul.mubr.bf16.gmra.mrb[0].mxu0 %v1327
    %v1458 = vpop.f32.mrb[0].mxu0
    %v1459 = vadd.f32 %v1403, %v1458
    %v1460 = vpop.f32.mrb[0].mxu0
    %v1461 = vpop.f32.mrb[0].mxu0
    %v1462 = vadd.f32 %v1406, %v1461
    %v1463 = vpop.f32.mrb[0].mxu0
    %1464 = vmatprep.mubr.bf16.mxu0 %v1334
    %1465 = vmatmul.mubr.bf16.gmra.mrb[0].mxu0 %v1333
    %v1466 = vpop.f32.mrb[0].mxu0
    %v1467 = vadd.f32 %v1411, %v1466
    %v1468 = vpop.f32.mrb[0].mxu0
    %v1469 = vpop.f32.mrb[0].mxu0
    %v1470 = vadd.f32 %v1414, %v1469
    %v1471 = vpop.f32.mrb[0].mxu0
    %1472 = vmatprep.mubr.bf16.mxu0 %v1340
    %1473 = vmatmul.mubr.bf16.gmra.mrb[0].mxu0 %v1339
    %v1474 = vpop.f32.mrb[0].mxu0
    %v1475 = vadd.f32 %v1419, %v1474
    %v1476 = vpop.f32.mrb[0].mxu0
    %v1477 = vpop.f32.mrb[0].mxu0
    %v1478 = vpop.f32.mrb[0].mxu0
    %1479 = vdwg.mxu0
    %1480 = vmatprep.subr.bf16.mxu0 0
    %1481 = vmatpush1.bf16.msra.mxu0 %v1141
    %1482 = vmatprep.subr.bf16.mxu0 0
    %1483 = vmatpush1.bf16.msra.mxu0 %v1142
    %1484 = vmatprep.subr.bf16.mxu0 0
    %1485 = vmatpush1.bf16.msra.mxu0 %v1143
    %1486 = vmatprep.subr.bf16.mxu0 0
    %1487 = vmatpush1.bf16.msra.mxu0 %v1192
    %1488 = vmatprep.subr.bf16.mxu0 0
    %1489 = vmatpush1.bf16.msra.mxu0 %v1193
    %1490 = vmatprep.subr.bf16.mxu0 0
    %1491 = vmatpush1.bf16.msra.mxu0 %v1194
    %1492 = vmatprep.subr.bf16.mxu0 0
    %1493 = vmatpush1.bf16.msra.mxu0 %v1195
    %1494 = vmatprep.subr.bf16.mxu0 0
    %1495 = vmatpush1.bf16.msra.mxu0 %v1196
    %1496 = vmatprep.subr.bf16.mxu0 0
    %1497 = vmatpush1.bf16.msra.mxu0 %v1245
    %1498 = vmatprep.subr.bf16.mxu0 0
    %1499 = vmatpush1.bf16.msra.mxu0 %v1246
    %1500 = vmatprep.subr.bf16.mxu0 0
    %1501 = vmatpush1.bf16.msra.mxu0 %v1247
    %1502 = vmatprep.subr.bf16.mxu0 0
    %1503 = vmatpush1.bf16.msra.mxu0 %v1248
    %1504 = vmatprep.subr.bf16.mxu0 0
    %1505 = vmatpush1.bf16.msra.mxu0 %v1249
    %1506 = vmatprep.subr.bf16.mxu0 0
    %1507 = vmatpush1.bf16.msra.mxu0 0
    %1508 = vmatprep.subr.bf16.mxu0 0
    %1509 = vmatpush1.bf16.msra.mxu0 0
    %1510 = vmatprep.subr.bf16.mxu0 0
    %1511 = vmatpush1.bf16.msra.mxu0 0
    %1512 = vmatprep.mubr.bf16.mxu0 %v1360
    %1513 = vmatmul.mubr.bf16.gmra.mrb[0].mxu0 %v1329
    %v1514 = vpop.f32.mrb[0].mxu0
    %v1515 = vadd.f32 %v1459, %v1514
    %v1516 = vpop.f32.mrb[0].mxu0
    %v1517 = vpop.f32.mrb[0].mxu0
    %v1518 = vadd.f32 %v1462, %v1517
    %v1519 = vpop.f32.mrb[0].mxu0
    %1520 = vmatprep.mubr.bf16.mxu0 %v1363
    %1521 = vmatmul.mubr.bf16.gmra.mrb[0].mxu0 %v1335
    %v1522 = vpop.f32.mrb[0].mxu0
    %v1523 = vadd.f32 %v1467, %v1522
    %v1524 = vpop.f32.mrb[0].mxu0
    %v1525 = vpop.f32.mrb[0].mxu0
    %v1526 = vadd.f32 %v1470, %v1525
    %v1527 = vpop.f32.mrb[0].mxu0
    %1528 = vmatprep.mubr.bf16.mxu0 %v1366
    %1529 = vmatmul.mubr.bf16.gmra.mrb[0].mxu0 %v1341
    %v1530 = vpop.f32.mrb[0].mxu0
    %v1531 = vadd.f32 %v1475, %v1530
    %v1532 = vpop.f32.mrb[0].mxu0
    %v1533 = vpop.f32.mrb[0].mxu0
    %v1534 = vpop.f32.mrb[0].mxu0
    %1535 = vdwg.mxu0
    %vm1536 = vcmp.ge.f32.partialorder %v1515, 0.0
    %vm1537 = vcmp.ge.f32.partialorder %v1518, 0.0
    %vm1538 = vcmp.ge.f32.partialorder %v1523, 0.0
    %vm1539 = vcmp.ge.f32.partialorder %v1526, 0.0
    %vm1540 = vcmp.ge.f32.partialorder %v1531, 0.0
    %v1541 = vmul.f32 %v1515, 0.01
    %v1542 = vmul.f32 %v1518, 0.01
    %v1543 = vmul.f32 %v1523, 0.01
    %v1544 = vmul.f32 %v1526, 0.01
    %v1545 = vmul.f32 %v1531, 0.01
    %v1546 = vsel %vm1536, %v1515, %v1541
    %v1547 = vsel %vm1537, %v1518, %v1542
    %v1548 = vsel %vm1538, %v1523, %v1543
    %v1549 = vsel %vm1539, %v1526, %v1544
    %v1550 = vsel %vm1540, %v1531, %v1545
    %v1551 = vld [vmem:[%s6] sm:$0xff]
    %v1552 = vld [vmem:[%s6 + $0x8] sm:$0xff]
    %v1553 = vld [vmem:[%s6 + $0x10] sm:$0xff]
    %v1554 = vld [vmem:[%s6 + $0x18] sm:$0xff]
    %v1555 = vld [vmem:[%s6 + $0x20] sm:$0xff]
    %v1556 = vld [vmem:[%s7] sm:$0xff]
    %v1557 = vld [vmem:[%s7 + $0x8] sm:$0xff]
    %v1558 = vld [vmem:[%s7 + $0x10] sm:$0xff]
    %v1559 = vld [vmem:[%s7 + $0x18] sm:$0xff]
    %v1560 = vld [vmem:[%s7 + $0x20] sm:$0xff]
    %vm1561 = vcmask 785408
    %v1562 = vsel %vm1561, %v1546, 0.0
    %1563 = vadd.xlane.f32.xlu0 %v1562
    %v1564 = vpop.xlane.xlu0 %1563
    %v1565 = vsel %vm1561, %v1547, 0.0
    %1566 = vadd.xlane.f32.xlu0 %v1565
    %v1567 = vpop.xlane.xlu0 %1566
    %v1568 = vsel %vm1561, %v1548, 0.0
    %1569 = vadd.xlane.f32.xlu0 %v1568
    %v1570 = vpop.xlane.xlu0 %1569
    %v1571 = vsel %vm1561, %v1549, 0.0
    %1572 = vadd.xlane.f32.xlu0 %v1571
    %v1573 = vpop.xlane.xlu0 %1572
    %v1574 = vsel %vm1561, %v1550, 0.0
    %1575 = vadd.xlane.f32.xlu0 %v1574
    %v1576 = vpop.xlane.xlu0 %1575
    %v1577 = vmul.f32 %v1564, 0.010416667
    %v1578 = vmul.f32 %v1567, 0.010416667
    %v1579 = vmul.f32 %v1570, 0.010416667
    %v1580 = vmul.f32 %v1573, 0.010416667
    %v1581 = vmul.f32 %v1576, 0.010416667
    %v1582 = vsub.f32 %v1546, %v1577
    %v1583 = vsub.f32 %v1547, %v1578
    %v1584 = vsub.f32 %v1548, %v1579
    %v1585 = vsub.f32 %v1549, %v1580
    %v1586 = vsub.f32 %v1550, %v1581
    %v1587 = vmul.f32 %v1582, %v1582
    %v1588 = vmul.f32 %v1583, %v1583
    %v1589 = vmul.f32 %v1584, %v1584
    %v1590 = vmul.f32 %v1585, %v1585
    %v1591 = vmul.f32 %v1586, %v1586
    %v1592 = vsel %vm1561, %v1587, 0.0
    %1593 = vadd.xlane.f32.xlu0 %v1592
    %v1594 = vpop.xlane.xlu0 %1593
    %v1595 = vsel %vm1561, %v1588, 0.0
    %1596 = vadd.xlane.f32.xlu0 %v1595
    %v1597 = vpop.xlane.xlu0 %1596
    %v1598 = vsel %vm1561, %v1589, 0.0
    %1599 = vadd.xlane.f32.xlu0 %v1598
    %v1600 = vpop.xlane.xlu0 %1599
    %v1601 = vsel %vm1561, %v1590, 0.0
    %1602 = vadd.xlane.f32.xlu0 %v1601
    %v1603 = vpop.xlane.xlu0 %1602
    %v1604 = vsel %vm1561, %v1591, 0.0
    %1605 = vadd.xlane.f32.xlu0 %v1604
    %v1606 = vpop.xlane.xlu0 %1605
    %v1607 = vmul.f32 %v1594, 0.010416667
    %v1608 = vmul.f32 %v1597, 0.010416667
    %v1609 = vmul.f32 %v1600, 0.010416667
    %v1610 = vmul.f32 %v1603, 0.010416667
    %v1611 = vmul.f32 %v1606, 0.010416667
    %v1612 = vadd.f32 %v1607, 1e-05
    %v1613 = vadd.f32 %v1608, 1e-05
    %v1614 = vadd.f32 %v1609, 1e-05
    %v1615 = vadd.f32 %v1610, 1e-05
    %v1616 = vadd.f32 %v1611, 1e-05
    %v1617 = vrsqrt.pop %v1612
    %v1618 = vrsqrt.pop %v1613
    %v1619 = vrsqrt.pop %v1614
    %v1620 = vrsqrt.pop %v1615
    %v1621 = vrsqrt.pop %v1616
    %v1622 = vmul.f32 %v1582, %v1617
    %v1623 = vmul.f32 %v1583, %v1618
    %v1624 = vmul.f32 %v1584, %v1619
    %v1625 = vmul.f32 %v1585, %v1620
    %v1626 = vmul.f32 %v1586, %v1621
    %1628 = vset.pattern.permute.xlu0 0
    %1629 = vperm.xlu0 %1628, %v1551
    %v1630 = vpop.permute.xlu0 %1629
    %1633 = vset.pattern.permute.xlu0 0
    %1634 = vperm.xlu0 %1633, %v1552
    %v1635 = vpop.permute.xlu0 %1634
    %1638 = vset.pattern.permute.xlu0 0
    %1639 = vperm.xlu0 %1638, %v1553
    %v1640 = vpop.permute.xlu0 %1639
    %1643 = vset.pattern.permute.xlu0 0
    %1644 = vperm.xlu0 %1643, %v1554
    %v1645 = vpop.permute.xlu0 %1644
    %1648 = vset.pattern.permute.xlu0 0
    %1649 = vperm.xlu0 %1648, %v1555
    %v1650 = vpop.permute.xlu0 %1649
    %v1652 = vmul.f32 %v1622, %v1630
    %v1653 = vmul.f32 %v1623, %v1635
    %v1654 = vmul.f32 %v1624, %v1640
    %v1655 = vmul.f32 %v1625, %v1645
    %v1656 = vmul.f32 %v1626, %v1650
    %1658 = vset.pattern.permute.xlu0 0
    %1659 = vperm.xlu0 %1658, %v1556
    %v1660 = vpop.permute.xlu0 %1659
    %1663 = vset.pattern.permute.xlu0 0
    %1664 = vperm.xlu0 %1663, %v1557
    %v1665 = vpop.permute.xlu0 %1664
    %1668 = vset.pattern.permute.xlu0 0
    %1669 = vperm.xlu0 %1668, %v1558
    %v1670 = vpop.permute.xlu0 %1669
    %1673 = vset.pattern.permute.xlu0 0
    %1674 = vperm.xlu0 %1673, %v1559
    %v1675 = vpop.permute.xlu0 %1674
    %1678 = vset.pattern.permute.xlu0 0
    %1679 = vperm.xlu0 %1678, %v1560
    %v1680 = vpop.permute.xlu0 %1679
    %v1682 = vadd.f32 %v1652, %v1660
    %v1683 = vadd.f32 %v1653, %v1665
    %v1684 = vadd.f32 %v1654, %v1670
    %v1685 = vadd.f32 %v1655, %v1675
    %v1686 = vadd.f32 %v1656, %v1680
    %v1687 = vpack.c.bf16 %v1683, %v1682
    %v1688 = vpack.c.bf16 %v1685, %v1684
    %v1689 = vpack.c.bf16 %v1686, %v1686
    %v1690 = vld [vmem:[%s8] sm:$0xff]
    %v1691 = vld [vmem:[%s8 + $0x8] sm:$0xf]
    %v1692 = vld [vmem:[%s8 + $0xc] sm:$0xff]
    %v1693 = vld [vmem:[%s8 + $0x14] sm:$0xf]
    %v1694 = vld [vmem:[%s8 + $0x18] sm:$0xff]
    %v1695 = vld [vmem:[%s8 + $0x20] sm:$0xf]
    %v1696 = vld [vmem:[%s8 + $0x24] sm:$0xff]
    %v1697 = vld [vmem:[%s8 + $0x2c] sm:$0xf]
    %1701 = vrot.lane.b32.xlu0 %v1687, 41
    %v1702 = vpop.permute.xlu0 %1701
    %1703 = vrot.lane.b32.xlu0 %v1688, 41
    %v1704 = vpop.permute.xlu0 %1703
    %1705 = vrot.lane.b32.xlu0 %v1689, 41
    %v1706 = vpop.permute.xlu0 %1705
    %1707 = vrot.lane.b32.xlu0 %v1687, 9
    %v1708 = vpop.permute.xlu0 %1707
    %1709 = vrot.lane.b32.xlu0 %v1688, 9
    %v1710 = vpop.permute.xlu0 %1709
    %1711 = vrot.lane.b32.xlu0 %v1689, 9
    %v1712 = vpop.permute.xlu0 %1711
    %v1715 = vsel %vm847, %v1702, %v1708
    %v1719 = vsel %vm847, %v1704, %v1710
    %v1723 = vsel %vm847, %v1706, %v1712
    %v1725 = vmul.bf16 %v1715, %v874
    %v1726 = vmul.bf16 %v1719, %v874
    %v1727 = vmul.bf16 %v1723, %v874
    %1728 = vrot.lane.b32.xlu0 %v1687, 40
    %v1729 = vpop.permute.xlu0 %1728
    %1730 = vrot.lane.b32.xlu0 %v1688, 40
    %v1731 = vpop.permute.xlu0 %1730
    %1732 = vrot.lane.b32.xlu0 %v1689, 40
    %v1733 = vpop.permute.xlu0 %1732
    %1734 = vrot.lane.b32.xlu0 %v1687, 8
    %v1735 = vpop.permute.xlu0 %1734
    %1736 = vrot.lane.b32.xlu0 %v1688, 8
    %v1737 = vpop.permute.xlu0 %1736
    %1738 = vrot.lane.b32.xlu0 %v1689, 8
    %v1739 = vpop.permute.xlu0 %1738
    %v1742 = vsel %vm433, %v1729, %v1735
    %v1746 = vsel %vm433, %v1731, %v1737
    %v1750 = vsel %vm433, %v1733, %v1739
    %v1752 = vmul.bf16 %v1742, %v926
    %v1753 = vmul.bf16 %v1746, %v926
    %v1754 = vmul.bf16 %v1750, %v926
    %1755 = vrot.lane.b32.xlu0 %v1687, 39
    %v1756 = vpop.permute.xlu0 %1755
    %1757 = vrot.lane.b32.xlu0 %v1688, 39
    %v1758 = vpop.permute.xlu0 %1757
    %1759 = vrot.lane.b32.xlu0 %v1689, 39
    %v1760 = vpop.permute.xlu0 %1759
    %1761 = vrot.lane.b32.xlu0 %v1687, 7
    %v1762 = vpop.permute.xlu0 %1761
    %1763 = vrot.lane.b32.xlu0 %v1688, 7
    %v1764 = vpop.permute.xlu0 %1763
    %1765 = vrot.lane.b32.xlu0 %v1689, 7
    %v1766 = vpop.permute.xlu0 %1765
    %v1769 = vsel %vm952, %v1756, %v1762
    %v1773 = vsel %vm952, %v1758, %v1764
    %v1777 = vsel %vm952, %v1760, %v1766
    %v1779 = vmul.bf16 %v1769, %v979
    %v1780 = vmul.bf16 %v1773, %v979
    %v1781 = vmul.bf16 %v1777, %v979
    %1782 = vrot.lane.b32.xlu0 %v1687, 33
    %v1783 = vpop.permute.xlu0 %1782
    %1784 = vrot.lane.b32.xlu0 %v1688, 33
    %v1785 = vpop.permute.xlu0 %1784
    %1786 = vrot.lane.b32.xlu0 %v1689, 33
    %v1787 = vpop.permute.xlu0 %1786
    %1788 = vrot.lane.b32.xlu0 %v1687, 1
    %v1789 = vpop.permute.xlu0 %1788
    %1790 = vrot.lane.b32.xlu0 %v1688, 1
    %v1791 = vpop.permute.xlu0 %1790
    %1792 = vrot.lane.b32.xlu0 %v1689, 1
    %v1793 = vpop.permute.xlu0 %1792
    %v1796 = vsel %vm1005, %v1783, %v1789
    %v1800 = vsel %vm1005, %v1785, %v1791
    %v1804 = vsel %vm1005, %v1787, %v1793
    %v1806 = vmul.bf16 %v1796, %v1032
    %v1807 = vmul.bf16 %v1800, %v1032
    %v1808 = vmul.bf16 %v1804, %v1032
    %1809 = vrot.lane.b32.xlu0 %v1687, 127
    %v1810 = vpop.permute.xlu0 %1809
    %1811 = vrot.lane.b32.xlu0 %v1688, 127
    %v1812 = vpop.permute.xlu0 %1811
    %1813 = vrot.lane.b32.xlu0 %v1689, 127
    %v1814 = vpop.permute.xlu0 %1813
    %1815 = vrot.lane.b32.xlu0 %v1687, 95
    %v1816 = vpop.permute.xlu0 %1815
    %1817 = vrot.lane.b32.xlu0 %v1688, 95
    %v1818 = vpop.permute.xlu0 %1817
    %1819 = vrot.lane.b32.xlu0 %v1689, 95
    %v1820 = vpop.permute.xlu0 %1819
    %v1823 = vsel %vm1058, %v1810, %v1816
    %v1827 = vsel %vm1058, %v1812, %v1818
    %v1831 = vsel %vm1058, %v1814, %v1820
    %v1833 = vmul.bf16 %v1823, %v1085
    %v1834 = vmul.bf16 %v1827, %v1085
    %v1835 = vmul.bf16 %v1831, %v1085
    %1836 = vrot.lane.b32.xlu0 %v1687, 121
    %v1837 = vpop.permute.xlu0 %1836
    %1838 = vrot.lane.b32.xlu0 %v1688, 121
    %v1839 = vpop.permute.xlu0 %1838
    %1840 = vrot.lane.b32.xlu0 %v1689, 121
    %v1841 = vpop.permute.xlu0 %1840
    %1842 = vrot.lane.b32.xlu0 %v1687, 89
    %v1843 = vpop.permute.xlu0 %1842
    %1844 = vrot.lane.b32.xlu0 %v1688, 89
    %v1845 = vpop.permute.xlu0 %1844
    %1846 = vrot.lane.b32.xlu0 %v1689, 89
    %v1847 = vpop.permute.xlu0 %1846
    %v1850 = vsel %vm1111, %v1837, %v1843
    %v1854 = vsel %vm1111, %v1839, %v1845
    %v1858 = vsel %vm1111, %v1841, %v1847
    %v1860 = vmul.bf16 %v1850, %v1138
    %v1861 = vmul.bf16 %v1854, %v1138
    %v1862 = vmul.bf16 %v1858, %v1138
    %1863 = vrot.lane.b32.xlu0 %v1687, 120
    %v1864 = vpop.permute.xlu0 %1863
    %1865 = vrot.lane.b32.xlu0 %v1688, 120
    %v1866 = vpop.permute.xlu0 %1865
    %1867 = vrot.lane.b32.xlu0 %v1689, 120
    %v1868 = vpop.permute.xlu0 %1867
    %1869 = vrot.lane.b32.xlu0 %v1687, 88
    %v1870 = vpop.permute.xlu0 %1869
    %1871 = vrot.lane.b32.xlu0 %v1688, 88
    %v1872 = vpop.permute.xlu0 %1871
    %1873 = vrot.lane.b32.xlu0 %v1689, 88
    %v1874 = vpop.permute.xlu0 %1873
    %v1877 = vsel %vm1164, %v1864, %v1870
    %v1881 = vsel %vm1164, %v1866, %v1872
    %v1885 = vsel %vm1164, %v1868, %v1874
    %v1887 = vmul.bf16 %v1877, %v1191
    %v1888 = vmul.bf16 %v1881, %v1191
    %v1889 = vmul.bf16 %v1885, %v1191
    %1890 = vrot.lane.b32.xlu0 %v1687, 119
    %v1891 = vpop.permute.xlu0 %1890
    %1892 = vrot.lane.b32.xlu0 %v1688, 119
    %v1893 = vpop.permute.xlu0 %1892
    %1894 = vrot.lane.b32.xlu0 %v1689, 119
    %v1895 = vpop.permute.xlu0 %1894
    %1896 = vrot.lane.b32.xlu0 %v1687, 87
    %v1897 = vpop.permute.xlu0 %1896
    %1898 = vrot.lane.b32.xlu0 %v1688, 87
    %v1899 = vpop.permute.xlu0 %1898
    %1900 = vrot.lane.b32.xlu0 %v1689, 87
    %v1901 = vpop.permute.xlu0 %1900
    %v1904 = vsel %vm1217, %v1891, %v1897
    %v1908 = vsel %vm1217, %v1893, %v1899
    %v1912 = vsel %vm1217, %v1895, %v1901
    %v1914 = vmul.bf16 %v1904, %v1244
    %v1915 = vmul.bf16 %v1908, %v1244
    %v1916 = vmul.bf16 %v1912, %v1244
    %vm1920 = vcmask 1043456
    %v1921 = vrot.slane %v1752, 4
    %v1922 = vrot.slane %v1753, 4
    %v1923 = vsel %vm1920, %v1921, %v1922
    %v1924 = vrot.slane %v1754, 4
    %v1925 = vsel %vm1920, %v1922, %v1924
    %v1931 = vrot.slane %v1806, 4
    %v1932 = vrot.slane %v1807, 4
    %v1933 = vsel %vm1920, %v1931, %v1932
    %v1934 = vrot.slane %v1808, 4
    %v1935 = vsel %vm1920, %v1932, %v1934
    %v1941 = vrot.slane %v1833, 4
    %v1942 = vrot.slane %v1834, 4
    %v1943 = vsel %vm1920, %v1941, %v1942
    %v1944 = vrot.slane %v1835, 4
    %v1945 = vsel %vm1920, %v1942, %v1944
    %v1951 = vrot.slane %v1887, 4
    %v1952 = vrot.slane %v1888, 4
    %v1953 = vsel %vm1920, %v1951, %v1952
    %v1954 = vrot.slane %v1889, 4
    %v1955 = vsel %vm1920, %v1952, %v1954
    %vm1958 = vcmask 1043456
    %v1961 = vsel %vm1958, %v1727, %v1921
    %v1965 = vsel %vm1958, %v1781, %v1931
    %v1969 = vsel %vm1958, %v1689, %v1941
    %v1973 = vsel %vm1958, %v1862, %v1951
    %v1975 = vld [vmem:[%s9] sm:$0xff]
    %v1976 = vld [vmem:[%s9 + $0x8] sm:$0xff]
    %v1977 = vld [vmem:[%s9 + $0x10] sm:$0xff]
    %v1978 = vld [vmem:[%s9 + $0x18] sm:$0xff]
    %1980 = vset.pattern.permute.xlu0 0
    %1981 = vperm.xlu0 %1980, %v1975
    %v1982 = vpop.permute.xlu0 %1981
    %1985 = vset.pattern.permute.xlu0 0
    %1986 = vperm.xlu0 %1985, %v1976
    %v1987 = vpop.permute.xlu0 %1986
    %1990 = vset.pattern.permute.xlu0 0
    %1991 = vperm.xlu0 %1990, %v1977
    %v1992 = vpop.permute.xlu0 %1991
    %1995 = vset.pattern.permute.xlu0 0
    %1996 = vperm.xlu0 %1995, %v1978
    %v1997 = vpop.permute.xlu0 %1996
    %v2007 = vunpack.c.l.b16 %v1690
    %v2008 = vunpack.c.h.b16 %v1690
    %v2009 = vunpack.c.l.b16 %v1691
    %v2010 = vunpack.c.l.b16 %v1692
    %v2011 = vunpack.c.h.b16 %v1692
    %v2012 = vunpack.c.l.b16 %v1693
    %v2013 = vunpack.c.l.b16 %v1694
    %v2014 = vunpack.c.h.b16 %v1694
    %v2015 = vunpack.c.l.b16 %v1695
    %v2016 = vunpack.c.l.b16 %v1696
    %v2017 = vunpack.c.h.b16 %v1696
    %v2018 = vunpack.c.l.b16 %v1697
    %v2019 = vpack.c.b16 %v2010, %v2007
    %v2020 = vpack.c.b16 %v2011, %v2008
    %v2021 = vpack.c.b16 %v2012, %v2009
    %v2022 = vpack.c.b16 %v2016, %v2013
    %v2023 = vpack.c.b16 %v2017, %v2014
    %v2024 = vpack.c.b16 %v2018, %v2015
    %vm2029 = vcmask 850944
    %v2031 = vsel %vm2029, %v2021, 0
    %v2034 = vsel %vm2029, %v2024, 0
    %v2037 = vsel %vm1958, %v1916, 0
    %2039 = vmatprep.subr.bf16.mxu0 0
    %2040 = vmatpush1.bf16.msra.mxu0 %v1725
    %2041 = vmatprep.subr.bf16.mxu0 0
    %2042 = vmatpush1.bf16.msra.mxu0 %v1726
    %2043 = vmatprep.subr.bf16.mxu0 0
    %2044 = vmatpush1.bf16.msra.mxu0 %v1961
    %2045 = vmatprep.subr.bf16.mxu0 0
    %2046 = vmatpush1.bf16.msra.mxu0 %v1923
    %2047 = vmatprep.subr.bf16.mxu0 0
    %2048 = vmatpush1.bf16.msra.mxu0 %v1925
    %2049 = vmatprep.subr.bf16.mxu0 0
    %2050 = vmatpush1.bf16.msra.mxu0 %v1779
    %2051 = vmatprep.subr.bf16.mxu0 0
    %2052 = vmatpush1.bf16.msra.mxu0 %v1780
    %2053 = vmatprep.subr.bf16.mxu0 0
    %2054 = vmatpush1.bf16.msra.mxu0 %v1965
    %2055 = vmatprep.subr.bf16.mxu0 0
    %2056 = vmatpush1.bf16.msra.mxu0 %v1933
    %2057 = vmatprep.subr.bf16.mxu0 0
    %2058 = vmatpush1.bf16.msra.mxu0 %v1935
    %2059 = vmatprep.subr.bf16.mxu0 0
    %2060 = vmatpush1.bf16.msra.mxu0 %v1687
    %2061 = vmatprep.subr.bf16.mxu0 0
    %2062 = vmatpush1.bf16.msra.mxu0 %v1688
    %2063 = vmatprep.subr.bf16.mxu0 0
    %2064 = vmatpush1.bf16.msra.mxu0 %v1969
    %2065 = vmatprep.subr.bf16.mxu0 0
    %2066 = vmatpush1.bf16.msra.mxu0 %v1943
    %2067 = vmatprep.subr.bf16.mxu0 0
    %2068 = vmatpush1.bf16.msra.mxu0 %v1945
    %2069 = vmatprep.subr.bf16.mxu0 0
    %2070 = vmatpush1.bf16.msra.mxu0 %v1860
    %2071 = vmatprep.mubr.bf16.mxu0 %v2020
    %2072 = vmatmul.mubr.bf16.gmra.mrb[0].mxu0 %v2019
    %v2073 = vpop.f32.mrb[0].mxu0
    %v2074 = vadd.f32 %v1982, %v2073
    %v2075 = vpop.f32.mrb[0].mxu0
    %v2076 = vpop.f32.mrb[0].mxu0
    %v2077 = vadd.f32 %v1987, %v2076
    %v2078 = vpop.f32.mrb[0].mxu0
    %2079 = vmatprep.mubr.bf16.mxu0 %v2023
    %2080 = vmatmul.mubr.bf16.gmra.mrb[0].mxu0 %v2022
    %v2081 = vpop.f32.mrb[0].mxu0
    %v2082 = vadd.f32 %v1992, %v2081
    %v2083 = vpop.f32.mrb[0].mxu0
    %v2084 = vpop.f32.mrb[0].mxu0
    %v2085 = vadd.f32 %v1997, %v2084
    %v2086 = vpop.f32.mrb[0].mxu0
    %2087 = vdwg.mxu0
    %2088 = vmatprep.subr.bf16.mxu0 0
    %2089 = vmatpush1.bf16.msra.mxu0 %v1861
    %2090 = vmatprep.subr.bf16.mxu0 0
    %2091 = vmatpush1.bf16.msra.mxu0 %v1973
    %2092 = vmatprep.subr.bf16.mxu0 0
    %2093 = vmatpush1.bf16.msra.mxu0 %v1953
    %2094 = vmatprep.subr.bf16.mxu0 0
    %2095 = vmatpush1.bf16.msra.mxu0 %v1955
    %2096 = vmatprep.subr.bf16.mxu0 0
    %2097 = vmatpush1.bf16.msra.mxu0 %v1914
    %2098 = vmatprep.subr.bf16.mxu0 0
    %2099 = vmatpush1.bf16.msra.mxu0 %v1915
    %2100 = vmatprep.subr.bf16.mxu0 0
    %2101 = vmatpush1.bf16.msra.mxu0 %v2037
    %2102 = vmatprep.subr.bf16.mxu0 0
    %2103 = vmatpush1.bf16.msra.mxu0 0
    %2104 = vmatprep.subr.bf16.mxu0 0
    %2105 = vmatpush1.bf16.msra.mxu0 0
    %2106 = vmatprep.subr.bf16.mxu0 0
    %2107 = vmatpush1.bf16.msra.mxu0 0
    %2108 = vmatprep.subr.bf16.mxu0 0
    %2109 = vmatpush1.bf16.msra.mxu0 0
    %2110 = vmatprep.subr.bf16.mxu0 0
    %2111 = vmatpush1.bf16.msra.mxu0 0
    %2112 = vmatprep.subr.bf16.mxu0 0
    %2113 = vmatpush1.bf16.msra.mxu0 0
    %2114 = vmatprep.subr.bf16.mxu0 0
    %2115 = vmatpush1.bf16.msra.mxu0 0
    %2116 = vmatprep.subr.bf16.mxu0 0
    %2117 = vmatpush1.bf16.msra.mxu0 0
    %2118 = vmatprep.subr.bf16.mxu0 0
    %2119 = vmatpush1.bf16.msra.mxu0 0
    %2120 = vmatprep.mubr.bf16.mxu0 0
    %2121 = vmatmul.mubr.bf16.gmra.mrb[0].mxu0 %v2031
    %v2122 = vpop.f32.mrb[0].mxu0
    %v2123 = vadd.f32 %v2074, %v2122
    %v2124 = vpop.f32.mrb[0].mxu0
    %v2125 = vpop.f32.mrb[0].mxu0
    %v2126 = vadd.f32 %v2077, %v2125
    %v2127 = vpop.f32.mrb[0].mxu0
    %2128 = vmatprep.mubr.bf16.mxu0 0
    %2129 = vmatmul.mubr.bf16.gmra.mrb[0].mxu0 %v2034
    %v2130 = vpop.f32.mrb[0].mxu0
    %v2131 = vadd.f32 %v2082, %v2130
    %v2132 = vpop.f32.mrb[0].mxu0
    %v2133 = vpop.f32.mrb[0].mxu0
    %v2134 = vadd.f32 %v2085, %v2133
    %v2135 = vpop.f32.mrb[0].mxu0
    %2136 = vdwg.mxu0
    %vm2137 = vcmp.ge.f32.partialorder %v2123, 0.0
    %vm2138 = vcmp.ge.f32.partialorder %v2126, 0.0
    %vm2139 = vcmp.ge.f32.partialorder %v2131, 0.0
    %vm2140 = vcmp.ge.f32.partialorder %v2134, 0.0
    %v2141 = vmul.f32 %v2123, 0.01
    %v2142 = vmul.f32 %v2126, 0.01
    %v2143 = vmul.f32 %v2131, 0.01
    %v2144 = vmul.f32 %v2134, 0.01
    %v2145 = vsel %vm2137, %v2123, %v2141
    %v2146 = vsel %vm2138, %v2126, %v2142
    %v2147 = vsel %vm2139, %v2131, %v2143
    %v2148 = vsel %vm2140, %v2134, %v2144
    %v2149 = vld [vmem:[%s10] sm:$0xff]
    %v2150 = vld [vmem:[%s10 + $0x8] sm:$0xff]
    %v2151 = vld [vmem:[%s10 + $0x10] sm:$0xff]
    %v2152 = vld [vmem:[%s10 + $0x18] sm:$0xff]
    %v2153 = vld [vmem:[%s11] sm:$0xff]
    %v2154 = vld [vmem:[%s11 + $0x8] sm:$0xff]
    %v2155 = vld [vmem:[%s11 + $0x10] sm:$0xff]
    %v2156 = vld [vmem:[%s11 + $0x18] sm:$0xff]
    %v2157 = vsel %vm1561, %v2145, 0.0
    %2158 = vadd.xlane.f32.xlu0 %v2157
    %v2159 = vpop.xlane.xlu0 %2158
    %v2160 = vsel %vm1561, %v2146, 0.0
    %2161 = vadd.xlane.f32.xlu0 %v2160
    %v2162 = vpop.xlane.xlu0 %2161
    %v2163 = vsel %vm1561, %v2147, 0.0
    %2164 = vadd.xlane.f32.xlu0 %v2163
    %v2165 = vpop.xlane.xlu0 %2164
    %v2166 = vsel %vm1561, %v2148, 0.0
    %2167 = vadd.xlane.f32.xlu0 %v2166
    %v2168 = vpop.xlane.xlu0 %2167
    %v2169 = vmul.f32 %v2159, 0.010416667
    %v2170 = vmul.f32 %v2162, 0.010416667
    %v2171 = vmul.f32 %v2165, 0.010416667
    %v2172 = vmul.f32 %v2168, 0.010416667
    %v2173 = vsub.f32 %v2145, %v2169
    %v2174 = vsub.f32 %v2146, %v2170
    %v2175 = vsub.f32 %v2147, %v2171
    %v2176 = vsub.f32 %v2148, %v2172
    %v2177 = vmul.f32 %v2173, %v2173
    %v2178 = vmul.f32 %v2174, %v2174
    %v2179 = vmul.f32 %v2175, %v2175
    %v2180 = vmul.f32 %v2176, %v2176
    %v2181 = vsel %vm1561, %v2177, 0.0
    %2182 = vadd.xlane.f32.xlu0 %v2181
    %v2183 = vpop.xlane.xlu0 %2182
    %v2184 = vsel %vm1561, %v2178, 0.0
    %2185 = vadd.xlane.f32.xlu0 %v2184
    %v2186 = vpop.xlane.xlu0 %2185
    %v2187 = vsel %vm1561, %v2179, 0.0
    %2188 = vadd.xlane.f32.xlu0 %v2187
    %v2189 = vpop.xlane.xlu0 %2188
    %v2190 = vsel %vm1561, %v2180, 0.0
    %2191 = vadd.xlane.f32.xlu0 %v2190
    %v2192 = vpop.xlane.xlu0 %2191
    %v2193 = vmul.f32 %v2183, 0.010416667
    %v2194 = vmul.f32 %v2186, 0.010416667
    %v2195 = vmul.f32 %v2189, 0.010416667
    %v2196 = vmul.f32 %v2192, 0.010416667
    %v2197 = vadd.f32 %v2193, 1e-05
    %v2198 = vadd.f32 %v2194, 1e-05
    %v2199 = vadd.f32 %v2195, 1e-05
    %v2200 = vadd.f32 %v2196, 1e-05
    %v2201 = vrsqrt.pop %v2197
    %v2202 = vrsqrt.pop %v2198
    %v2203 = vrsqrt.pop %v2199
    %v2204 = vrsqrt.pop %v2200
    %v2205 = vmul.f32 %v2173, %v2201
    %v2206 = vmul.f32 %v2174, %v2202
    %v2207 = vmul.f32 %v2175, %v2203
    %v2208 = vmul.f32 %v2176, %v2204
    %2210 = vset.pattern.permute.xlu0 0
    %2211 = vperm.xlu0 %2210, %v2149
    %v2212 = vpop.permute.xlu0 %2211
    %2215 = vset.pattern.permute.xlu0 0
    %2216 = vperm.xlu0 %2215, %v2150
    %v2217 = vpop.permute.xlu0 %2216
    %2220 = vset.pattern.permute.xlu0 0
    %2221 = vperm.xlu0 %2220, %v2151
    %v2222 = vpop.permute.xlu0 %2221
    %2225 = vset.pattern.permute.xlu0 0
    %2226 = vperm.xlu0 %2225, %v2152
    %v2227 = vpop.permute.xlu0 %2226
    %v2229 = vmul.f32 %v2205, %v2212
    %v2230 = vmul.f32 %v2206, %v2217
    %v2231 = vmul.f32 %v2207, %v2222
    %v2232 = vmul.f32 %v2208, %v2227
    %2234 = vset.pattern.permute.xlu0 0
    %2235 = vperm.xlu0 %2234, %v2153
    %v2236 = vpop.permute.xlu0 %2235
    %2239 = vset.pattern.permute.xlu0 0
    %2240 = vperm.xlu0 %2239, %v2154
    %v2241 = vpop.permute.xlu0 %2240
    %2244 = vset.pattern.permute.xlu0 0
    %2245 = vperm.xlu0 %2244, %v2155
    %v2246 = vpop.permute.xlu0 %2245
    %2249 = vset.pattern.permute.xlu0 0
    %2250 = vperm.xlu0 %2249, %v2156
    %v2251 = vpop.permute.xlu0 %2250
    %v2253 = vadd.f32 %v2229, %v2236
    %v2254 = vadd.f32 %v2230, %v2241
    %v2255 = vadd.f32 %v2231, %v2246
    %v2256 = vadd.f32 %v2232, %v2251
    %v2257 = vpack.c.bf16 %v2254, %v2253
    %v2258 = vpack.c.bf16 %v2256, %v2255
    %2261 = vrot.lane.b32.xlu0 %v2257, 80
    %v2262 = vpop.permute.xlu0 %2261
    %2263 = vrot.lane.b32.xlu0 %v2258, 80
    %v2264 = vpop.permute.xlu0 %2263
    %v2265 = vunpack.c.l.b16 %v2257
    %v2266 = vunpack.c.h.b16 %v2257
    %v2267 = vunpack.c.l.b16 %v2258
    %v2268 = vunpack.c.h.b16 %v2258
    %v2269 = vunpack.c.l.b16 %v2262
    %v2270 = vunpack.c.h.b16 %v2262
    %v2271 = vunpack.c.l.b16 %v2264
    %v2272 = vunpack.c.h.b16 %v2264
    %v2273 = vpack.c.b16 %v2265, %v2265
    %v2274 = vpack.c.b16 %v2266, %v2266
    %v2275 = vpack.c.b16 %v2267, %v2267
    %v2276 = vpack.c.b16 %v2268, %v2268
    %v2277 = vpack.c.b16 %v2269, %v2269
    %v2278 = vpack.c.b16 %v2270, %v2270
    %v2279 = vpack.c.b16 %v2271, %v2271
    %v2280 = vpack.c.b16 %v2272, %v2272
    %vm2289 = vcmask 388096
    %2290 = vst.msk [vmem:[#allocation2] sm:$0xf] %vm2289, %v2273
    %2291 = vst.msk [vmem:[#allocation2 + $0x4] sm:$0xf] %vm2289, %v2274
    %2292 = vst.msk [vmem:[#allocation2 + $0x8] sm:$0xf] %vm2289, %v2275
    %2293 = vst.msk [vmem:[#allocation2 + $0xc] sm:$0xf] %vm2289, %v2276
    %2294 = vst.msk [vmem:[#allocation2 + $0x10] sm:$0xf] %vm2289, %v2277
    %2295 = vst.msk [vmem:[#allocation2 + $0x14] sm:$0xf] %vm2289, %v2278
    %2296 = vst.msk [vmem:[#allocation2 + $0x18] sm:$0xf] %vm2289, %v2279
    %2297 = vst.msk [vmem:[#allocation2 + $0x1c] sm:$0xf] %vm2289, %v2280
    // Predicated region
    $region54: #{tpu_custom_call.1} parent=1 // pred_check
      _
    $region55: #{tpu_custom_call.1} parent=1 // pred_check_branch
      %2299 = sbr.rel (0) target = $region57
    $region56: #{tpu_custom_call.1} parent=1 // pred_region
      %s2301 = ssub.s32 512, 512
      %2302 = vsyncadd [#allocation3], %s2301
      %s2303 = sshll.u32 [#allocation2], 4
      %s2304 = int_to_ptr.vmem [resolvable:$true] %s2303
      %2309 = dma.vmem_to_hbm [thread:$0]  %s2304, 512, %s13, [#allocation3], 64, 64, 4
    $region57: #{tpu_custom_call.1} parent=1 // pred_fallthru
      _
    // Predicated region
    $region58: #{tpu_custom_call.1} parent=1 // pred_check
      _
    $region59: #{tpu_custom_call.1} parent=1 // pred_check_branch
      %2311 = sbr.rel (0) target = $region61
    $region60: #{tpu_custom_call.1} parent=1 // pred_region
      %2312 = dma.done [#allocation3], 512
    $region61: #{tpu_custom_call.1} parent=1 // pred_fallthru
      _
    %2313 = vsyncpa [#allocation3], 1

</llo_original>
